<compile_context>
chip_gen: v5e
topology: v5e:2x2
jax: 0.10.0
libtpu: 0.0.40
codegen_flags: <defaults>
</compile_context>

<pallas_src>
import functools

import jax
import jax.numpy as jnp
from jax.experimental import pallas as pl
from jax.experimental.pallas import tpu as pltpu

D_MODEL = 32
D_INNER = 64
LORDER = 20     # left (past) memory order of the DFSMN layer
LSTRIDE = 1     # left stride / dilation (1 in the module call)
LN_EPS = 1e-5
LANE = 128
PACK = LANE // D_MODEL          # 4 batch elements packed on the lane axis


def _round_up(v, m):
    return -(-v // m) * m


def _decoder_layer2_kernel(
    x_ref, m_ref,
    w1_ref, b1_ref, w2_ref, b2_ref, gamma_ref, beta_ref,
    we_ref, be_ref, ws_ref, filt_ref, mavg_ref,
    o_ref,
    *, gpb, t_pad, ntaps, pad8, lstride,
):
    x = x_ref[...]          # (RB, 128): RB = gpb * t_pad rows, 4 batch elements per row
    m = m_ref[...]          # (RB, 128): non-pad mask, pre-broadcast over channels

    # ---------- PositionwiseFeedForward (+ residual + LayerNorm), lane-packed ----------
    h = jnp.maximum(
        jnp.dot(x, w1_ref[...], preferred_element_type=jnp.float32) + b1_ref[...], 0.0)
    y = jnp.dot(h, w2_ref[...], preferred_element_type=jnp.float32) + b2_ref[...] + x
    # Per-lane-group (d_model=32) LayerNorm stats via block-diagonal averaging matmuls
    # (MXU is idle here) + single-pass variance E[y^2] - mu^2.
    mu = jnp.dot(y, mavg_ref[...], preferred_element_type=jnp.float32)
    ms = jnp.dot(y * y, mavg_ref[...], preferred_element_type=jnp.float32)
    var = ms - mu * mu
    y = (y - mu) * jax.lax.rsqrt(var + LN_EPS) * gamma_ref[...] + beta_ref[...]

    # ---------- non_pad_mask ----------
    y = y * m

    # ---------- DFSMN unidirectional layer ----------
    f = jnp.maximum(
        jnp.dot(y, we_ref[...], preferred_element_type=jnp.float32) + be_ref[...], 0.0)
    p = jnp.dot(f, ws_ref[...], preferred_element_type=jnp.float32)     # (RB, 128)

    rb = gpb * t_pad
    p3 = p.reshape(gpb, t_pad, LANE)
    conv3 = p3 * filt_ref[LORDER - 1:LORDER, :]                          # tap delay 0
    if ntaps > 1:
        # Zero-padded slab: pad8 zero rows in front of every packed group, so a tap can
        # never read across a batch-group boundary (no per-tap validity mask needed).
        slab = jnp.concatenate(
            [jnp.zeros((gpb, pad8, LANE), jnp.float32), p3], axis=1)
        slab = slab.reshape(gpb * (pad8 + t_pad), LANE)
        for j in range(1, ntaps):
            # Shift the whole slab on the sublane axis (XLU slot, free while VALU-bound),
            # then take the tile-aligned window.  j*lstride <= pad8, so the rolled rows in
            # the window always come from the same group's pad-or-data region.
            rolled = pltpu.roll(slab, shift=j * lstride, axis=0)
            shifted = rolled.reshape(gpb, pad8 + t_pad, LANE)[:, pad8:, :]
            conv3 = conv3 + shifted * filt_ref[LORDER - 1 - j:LORDER - j, :]

    out = (y + p + conv3.reshape(rb, LANE)) * m                          # residual + mask
    o_ref[...] = out.astype(o_ref.dtype)


def decoder_layer2(x, non_pad_mask, params, *, target_rows=1024):
    B, T, D = x.shape
    assert D == D_MODEL
    t_pad = _round_up(T, 8)

    # ---- batch packing: PACK=4 batch elements share the 128-lane axis ----
    nbg = -(-B // PACK)                       # number of packed groups
    if B >= 2 and nbg == 1:
        nbg = 2                               # one extra all-zero group -> >=2 grid steps
    # groups per block: large blocks amortize ~0.35us/step, but keep >=2 grid steps
    # whenever there are >=2 groups so both v7x TensorCores get work + DMA pipelining.
    gpb = max(1, min(nbg, target_rows // t_pad))
    if nbg >= 2:
        gpb = min(gpb, -(-nbg // 2))
    nbg = _round_up(nbg, gpb)
    grid = nbg // gpb
    b_pad = nbg * PACK
    rb = gpb * t_pad

    # ---- pack activations: (B, T, D) -> (nbg*t_pad, PACK*D), lane-dense ----
    xp = jnp.pad(x, ((0, b_pad - B), (0, t_pad - T), (0, 0)))
    mp = jnp.pad(jnp.broadcast_to(non_pad_mask, (B, T, D)),
                 ((0, b_pad - B), (0, t_pad - T), (0, 0)))

    def pack(a):
        return (a.reshape(nbg, PACK, t_pad, D)
                 .transpose(0, 2, 1, 3)
                 .reshape(nbg * t_pad, PACK * D))

    xpk = pack(xp)
    mpk = pack(mp)

    # ---- block-diagonal / lane-tiled weights (~0.6 MB total, loaded once) ----
    def bdiag(w):
        din, dout = w.shape
        out = jnp.zeros((PACK * din, PACK * dout), w.dtype)
        for g in range(PACK):
            out = out.at[g * din:(g + 1) * din, g * dout:(g + 1) * dout].set(w)
        return out

    tile = lambda v: jnp.tile(v, (1, PACK))
    w1p, w2p = bdiag(params["w1"]), bdiag(params["w2"])
    wep, wsp = bdiag(params["we"]), bdiag(params["ws"])
    b1p, b2p = tile(params["b1"]), tile(params["b2"])
    gammap, betap = tile(params["gamma"]), tile(params["beta"])
    bep = tile(params["be"])
    filtp = jnp.tile(params["filt"], (1, PACK))                  # (LORDER, 128)
    grp = jnp.arange(LANE) // D_MODEL
    mavg = (grp[:, None] == grp[None, :]).astype(jnp.float32) / D_MODEL   # (128, 128)

    # Taps whose delay >= T only ever read causal zero padding -> skip statically.
    ntaps = min(LORDER, (T - 1) // LSTRIDE + 1)
    pad = (ntaps - 1) * LSTRIDE
    pad8 = _round_up(pad, 8) if pad > 0 else 0

    kernel = functools.partial(
        _decoder_layer2_kernel, gpb=gpb, t_pad=t_pad, ntaps=ntaps, pad8=pad8,
        lstride=LSTRIDE)

    full = lambda a: pl.BlockSpec(a.shape, lambda g: (0,) * a.ndim)
    grid_spec = pltpu.PrefetchScalarGridSpec(
        num_scalar_prefetch=0,
        grid=(grid,),
        in_specs=[
            pl.BlockSpec((rb, LANE), lambda g: (g, 0)),    # packed activations
            pl.BlockSpec((rb, LANE), lambda g: (g, 0)),    # packed non_pad_mask
            full(w1p), full(b1p), full(w2p), full(b2p), full(gammap), full(betap),
            full(wep), full(bep), full(wsp), full(filtp), full(mavg),
        ],
        out_specs=pl.BlockSpec((rb, LANE), lambda g: (g, 0)),
    )

    out = pl.pallas_call(
        kernel,
        out_shape=jax.ShapeDtypeStruct((nbg * t_pad, LANE), x.dtype),
        grid_spec=grid_spec,
        compiler_params=pltpu.CompilerParams(dimension_semantics=("parallel",)),
    )(xpk, mpk, w1p, b1p, w2p, b2p, gammap, betap, wep, bep, wsp, filtp, mavg)

    # ---- unpack: (nbg*t_pad, PACK*D) -> (B, T, D) ----
    out = (out.reshape(nbg, t_pad, PACK, D)
              .transpose(0, 2, 1, 3)
              .reshape(b_pad, t_pad, D))
    return out[:B, :T, :]


def reference(x, mask, P):
    """Pure-JAX reference matching the PyTorch forward (eval mode)."""
    h = jnp.maximum(x @ P["w1"] + P["b1"], 0.0)
    y = h @ P["w2"] + P["b2"] + x
    mu = y.mean(-1, keepdims=True)
    var = ((y - mu) ** 2).mean(-1, keepdims=True)
    y = (y - mu) / jnp.sqrt(var + LN_EPS) * P["gamma"] + P["beta"]
    y = y * mask
    f = jnp.maximum(y @ P["we"] + P["be"], 0.0)
    p = f @ P["ws"]
    T = x.shape[1]
    p_pad = jnp.pad(p, ((0, 0), ((LORDER - 1) * LSTRIDE, 0), (0, 0)))
    conv = jnp.zeros_like(p)
    for k in range(LORDER):
        conv = conv + P["filt"][k][None, None, :] * p_pad[:, k * LSTRIDE:k * LSTRIDE + T, :]
    out = y + p + conv
    return out * mask


def make_params(key):
    ks = jax.random.split(key, 10)
    s = 0.1
    return {
        "w1": jax.random.normal(ks[0], (D_MODEL, D_INNER), jnp.float32) * s,
        "b1": jax.random.normal(ks[1], (1, D_INNER), jnp.float32) * s,
        "w2": jax.random.normal(ks[2], (D_INNER, D_MODEL), jnp.float32) * s,
        "b2": jax.random.normal(ks[3], (1, D_MODEL), jnp.float32) * s,
        "gamma": 1.0 + jax.random.normal(ks[4], (1, D_MODEL), jnp.float32) * s,
        "beta": jax.random.normal(ks[5], (1, D_MODEL), jnp.float32) * s,
        "we": jax.random.normal(ks[6], (D_MODEL, D_INNER), jnp.float32) * s,
        "be": jax.random.normal(ks[7], (1, D_INNER), jnp.float32) * s,
        "ws": jax.random.normal(ks[8], (D_INNER, D_MODEL), jnp.float32) * s,
        "filt": jax.random.normal(ks[9], (LORDER, D_MODEL), jnp.float32) * s,
    }


if __name__ == "__main__":
    key = jax.random.PRNGKey(0)
    k_x, k_p = jax.random.split(key)

    B, T = 2, 8
    x = jax.random.normal(k_x, (B, T, D_MODEL), jnp.float32)
    # non_pad_mask: (B, T, 1); zero out the last two frames of batch element 1
    mask = jnp.ones((B, T, 1), jnp.float32)
    mask = mask.at[1, T - 2:, 0].set(0.0)

    params = make_params(k_p)

    out = decoder_layer2(x, mask, params)
    out = jax.block_until_ready(out)

    ref = reference(x, mask, params)
    assert out.shape == (B, T, D_MODEL)
    assert jnp.allclose(out, ref, rtol=1e-5, atol=1e-5), (
        f"max abs err {jnp.max(jnp.abs(out - ref))}")

    print("KERNEL_OK")
</pallas_src>

<mosaic_0001>
module attributes {stable_mosaic.version = 11 : i64} {
  func.func @_decoder_layer2_kernel(%arg0: i32, %arg1: memref<8x128xf32, #tpu.memory_space<vmem>>, %arg2: memref<8x128xf32, #tpu.memory_space<vmem>>, %arg3: memref<128x256xf32, #tpu.memory_space<vmem>>, %arg4: memref<1x256xf32, #tpu.memory_space<vmem>>, %arg5: memref<256x128xf32, #tpu.memory_space<vmem>>, %arg6: memref<1x128xf32, #tpu.memory_space<vmem>>, %arg7: memref<1x128xf32, #tpu.memory_space<vmem>>, %arg8: memref<1x128xf32, #tpu.memory_space<vmem>>, %arg9: memref<128x256xf32, #tpu.memory_space<vmem>>, %arg10: memref<1x256xf32, #tpu.memory_space<vmem>>, %arg11: memref<256x128xf32, #tpu.memory_space<vmem>>, %arg12: memref<20x128xf32, #tpu.memory_space<vmem>>, %arg13: memref<128x128xf32, #tpu.memory_space<vmem>>, %arg14: memref<8x128xf32, #tpu.memory_space<vmem>>) attributes {dimension_semantics = [#tpu.dimension_semantics<parallel>], iteration_bounds = array<i64: 2>, scalar_prefetch = 0 : i64, scratch_operands = 0 : i64, tpu.core_type = #tpu.core_type<tc>, window_params = [{transform_indices = @transform_0, window_bounds = array<i64: 8, 128>}, {transform_indices = @transform_1, window_bounds = array<i64: 8, 128>}, {pipeline_mode = #tpu.pipeline_mode<synchronous>, transform_indices = @transform_2, window_bounds = array<i64: 128, 256>}, {pipeline_mode = #tpu.pipeline_mode<synchronous>, transform_indices = @transform_3, window_bounds = array<i64: 1, 256>}, {pipeline_mode = #tpu.pipeline_mode<synchronous>, transform_indices = @transform_4, window_bounds = array<i64: 256, 128>}, {pipeline_mode = #tpu.pipeline_mode<synchronous>, transform_indices = @transform_5, window_bounds = array<i64: 1, 128>}, {pipeline_mode = #tpu.pipeline_mode<synchronous>, transform_indices = @transform_6, window_bounds = array<i64: 1, 128>}, {pipeline_mode = #tpu.pipeline_mode<synchronous>, transform_indices = @transform_7, window_bounds = array<i64: 1, 128>}, {pipeline_mode = #tpu.pipeline_mode<synchronous>, transform_indices = @transform_8, window_bounds = array<i64: 128, 256>}, {pipeline_mode = #tpu.pipeline_mode<synchronous>, transform_indices = @transform_9, window_bounds = array<i64: 1, 256>}, {pipeline_mode = #tpu.pipeline_mode<synchronous>, transform_indices = @transform_10, window_bounds = array<i64: 256, 128>}, {pipeline_mode = #tpu.pipeline_mode<synchronous>, transform_indices = @transform_11, window_bounds = array<i64: 20, 128>}, {pipeline_mode = #tpu.pipeline_mode<synchronous>, transform_indices = @transform_12, window_bounds = array<i64: 128, 128>}, {transform_indices = @transform_13, window_bounds = array<i64: 8, 128>}]} {
    %c0 = arith.constant 0 : index
    %c0_0 = arith.constant 0 : index
    %0 = vector.load %arg1[%c0, %c0_0] : memref<8x128xf32, #tpu.memory_space<vmem>>, vector<8x128xf32>
    %c0_1 = arith.constant 0 : index
    %c0_2 = arith.constant 0 : index
    %1 = vector.load %arg2[%c0_1, %c0_2] : memref<8x128xf32, #tpu.memory_space<vmem>>, vector<8x128xf32>
    %c0_3 = arith.constant 0 : index
    %c0_4 = arith.constant 0 : index
    %2 = vector.load %arg3[%c0_3, %c0_4] : memref<128x256xf32, #tpu.memory_space<vmem>>, vector<128x256xf32>
    %cst = arith.constant dense<0.000000e+00> : vector<8x256xf32>
    %3 = tpu.matmul %0, %2, %cst {dimension_numbers = #tpu.dot_dimension_numbers<[1], [0], [0], [1], [0, 0, 1, 1], [], []>} : vector<8x128xf32>, vector<128x256xf32>, vector<8x256xf32> -> vector<8x256xf32>
    %c0_5 = arith.constant 0 : index
    %c0_6 = arith.constant 0 : index
    %4 = vector.load %arg4[%c0_5, %c0_6] : memref<1x256xf32, #tpu.memory_space<vmem>>, vector<1x256xf32>
    %5 = vector.broadcast %4 : vector<1x256xf32> to vector<8x256xf32>
    %6 = arith.addf %3, %5 : vector<8x256xf32>
    %cst_7 = arith.constant 0.000000e+00 : f32
    %7 = vector.broadcast %cst_7 : f32 to vector<8x256xf32>
    %8 = arith.maximumf %6, %7 : vector<8x256xf32>
    %c0_8 = arith.constant 0 : index
    %c0_9 = arith.constant 0 : index
    %9 = vector.load %arg5[%c0_8, %c0_9] : memref<256x128xf32, #tpu.memory_space<vmem>>, vector<256x128xf32>
    %cst_10 = arith.constant dense<0.000000e+00> : vector<8x128xf32>
    %10 = tpu.matmul %8, %9, %cst_10 {dimension_numbers = #tpu.dot_dimension_numbers<[1], [0], [0], [1], [0, 0, 1, 1], [], []>} : vector<8x256xf32>, vector<256x128xf32>, vector<8x128xf32> -> vector<8x128xf32>
    %c0_11 = arith.constant 0 : index
    %c0_12 = arith.constant 0 : index
    %11 = vector.load %arg6[%c0_11, %c0_12] : memref<1x128xf32, #tpu.memory_space<vmem>>, vector<1x128xf32>
    %12 = vector.broadcast %11 : vector<1x128xf32> to vector<8x128xf32>
    %13 = arith.addf %10, %12 : vector<8x128xf32>
    %14 = arith.addf %13, %0 : vector<8x128xf32>
    %c0_13 = arith.constant 0 : index
    %c0_14 = arith.constant 0 : index
    %15 = vector.load %arg13[%c0_13, %c0_14] : memref<128x128xf32, #tpu.memory_space<vmem>>, vector<128x128xf32>
    %cst_15 = arith.constant dense<0.000000e+00> : vector<8x128xf32>
    %16 = tpu.matmul %14, %15, %cst_15 {dimension_numbers = #tpu.dot_dimension_numbers<[1], [0], [0], [1], [0, 0, 1, 1], [], []>} : vector<8x128xf32>, vector<128x128xf32>, vector<8x128xf32> -> vector<8x128xf32>
    %17 = arith.mulf %14, %14 : vector<8x128xf32>
    %c0_16 = arith.constant 0 : index
    %c0_17 = arith.constant 0 : index
    %18 = vector.load %arg13[%c0_16, %c0_17] : memref<128x128xf32, #tpu.memory_space<vmem>>, vector<128x128xf32>
    %cst_18 = arith.constant dense<0.000000e+00> : vector<8x128xf32>
    %19 = tpu.matmul %17, %18, %cst_18 {dimension_numbers = #tpu.dot_dimension_numbers<[1], [0], [0], [1], [0, 0, 1, 1], [], []>} : vector<8x128xf32>, vector<128x128xf32>, vector<8x128xf32> -> vector<8x128xf32>
    %20 = arith.mulf %16, %16 : vector<8x128xf32>
    %21 = arith.subf %19, %20 : vector<8x128xf32>
    %22 = arith.subf %14, %16 : vector<8x128xf32>
    %cst_19 = arith.constant 9.99999974E-6 : f32
    %23 = vector.broadcast %cst_19 : f32 to vector<8x128xf32>
    %24 = arith.addf %21, %23 : vector<8x128xf32>
    %25 = math.rsqrt %24 : vector<8x128xf32>
    %26 = arith.mulf %22, %25 : vector<8x128xf32>
    %c0_20 = arith.constant 0 : index
    %c0_21 = arith.constant 0 : index
    %27 = vector.load %arg7[%c0_20, %c0_21] : memref<1x128xf32, #tpu.memory_space<vmem>>, vector<1x128xf32>
    %28 = vector.broadcast %27 : vector<1x128xf32> to vector<8x128xf32>
    %29 = arith.mulf %26, %28 : vector<8x128xf32>
    %c0_22 = arith.constant 0 : index
    %c0_23 = arith.constant 0 : index
    %30 = vector.load %arg8[%c0_22, %c0_23] : memref<1x128xf32, #tpu.memory_space<vmem>>, vector<1x128xf32>
    %31 = vector.broadcast %30 : vector<1x128xf32> to vector<8x128xf32>
    %32 = arith.addf %29, %31 : vector<8x128xf32>
    %33 = arith.mulf %32, %1 : vector<8x128xf32>
    %c0_24 = arith.constant 0 : index
    %c0_25 = arith.constant 0 : index
    %34 = vector.load %arg9[%c0_24, %c0_25] : memref<128x256xf32, #tpu.memory_space<vmem>>, vector<128x256xf32>
    %cst_26 = arith.constant dense<0.000000e+00> : vector<8x256xf32>
    %35 = tpu.matmul %33, %34, %cst_26 {dimension_numbers = #tpu.dot_dimension_numbers<[1], [0], [0], [1], [0, 0, 1, 1], [], []>} : vector<8x128xf32>, vector<128x256xf32>, vector<8x256xf32> -> vector<8x256xf32>
    %c0_27 = arith.constant 0 : index
    %c0_28 = arith.constant 0 : index
    %36 = vector.load %arg10[%c0_27, %c0_28] : memref<1x256xf32, #tpu.memory_space<vmem>>, vector<1x256xf32>
    %37 = vector.broadcast %36 : vector<1x256xf32> to vector<8x256xf32>
    %38 = arith.addf %35, %37 : vector<8x256xf32>
    %cst_29 = arith.constant 0.000000e+00 : f32
    %39 = vector.broadcast %cst_29 : f32 to vector<8x256xf32>
    %40 = arith.maximumf %38, %39 : vector<8x256xf32>
    %c0_30 = arith.constant 0 : index
    %c0_31 = arith.constant 0 : index
    %41 = vector.load %arg11[%c0_30, %c0_31] : memref<256x128xf32, #tpu.memory_space<vmem>>, vector<256x128xf32>
    %cst_32 = arith.constant dense<0.000000e+00> : vector<8x128xf32>
    %42 = tpu.matmul %40, %41, %cst_32 {dimension_numbers = #tpu.dot_dimension_numbers<[1], [0], [0], [1], [0, 0, 1, 1], [], []>} : vector<8x256xf32>, vector<256x128xf32>, vector<8x128xf32> -> vector<8x128xf32>
    %43 = vector.shape_cast %42 : vector<8x128xf32> to vector<1x8x128xf32>
    %c19 = arith.constant 19 : index
    %c0_33 = arith.constant 0 : index
    %44 = vector.load %arg12[%c19, %c0_33] : memref<20x128xf32, #tpu.memory_space<vmem>>, vector<1x128xf32>
    %45 = vector.shape_cast %44 : vector<1x128xf32> to vector<1x1x128xf32>
    %46 = vector.broadcast %45 : vector<1x1x128xf32> to vector<1x8x128xf32>
    %47 = arith.mulf %43, %46 : vector<1x8x128xf32>
    %cst_34 = arith.constant 0.000000e+00 : f32
    %48 = vector.broadcast %cst_34 : f32 to vector<1x8x128xf32>
    %49 = tpu.concatenate %48, %43 in 1 : vector<1x8x128xf32>, vector<1x8x128xf32> -> vector<1x16x128xf32>
    %50 = vector.shape_cast %49 : vector<1x16x128xf32> to vector<16x128xf32>
    %c1_i32 = arith.constant 1 : i32
    %51 = tpu.dynamic_rotate %50 by %c1_i32 dim 0 : vector<16x128xf32>, i32 -> vector<16x128xf32>
    %52 = vector.shape_cast %51 : vector<16x128xf32> to vector<1x16x128xf32>
    %53 = vector.extract_strided_slice %52 {offsets = [0, 8, 0], sizes = [1, 8, 128], strides = [1, 1, 1]} : vector<1x16x128xf32> to vector<1x8x128xf32>
    %c18 = arith.constant 18 : index
    %c0_35 = arith.constant 0 : index
    %54 = vector.load %arg12[%c18, %c0_35] : memref<20x128xf32, #tpu.memory_space<vmem>>, vector<1x128xf32>
    %55 = vector.shape_cast %54 : vector<1x128xf32> to vector<1x1x128xf32>
    %56 = vector.broadcast %55 : vector<1x1x128xf32> to vector<1x8x128xf32>
    %57 = arith.mulf %53, %56 : vector<1x8x128xf32>
    %58 = arith.addf %47, %57 : vector<1x8x128xf32>
    %c2_i32 = arith.constant 2 : i32
    %59 = tpu.dynamic_rotate %50 by %c2_i32 dim 0 : vector<16x128xf32>, i32 -> vector<16x128xf32>
    %60 = vector.shape_cast %59 : vector<16x128xf32> to vector<1x16x128xf32>
    %61 = vector.extract_strided_slice %60 {offsets = [0, 8, 0], sizes = [1, 8, 128], strides = [1, 1, 1]} : vector<1x16x128xf32> to vector<1x8x128xf32>
    %c17 = arith.constant 17 : index
    %c0_36 = arith.constant 0 : index
    %62 = vector.load %arg12[%c17, %c0_36] : memref<20x128xf32, #tpu.memory_space<vmem>>, vector<1x128xf32>
    %63 = vector.shape_cast %62 : vector<1x128xf32> to vector<1x1x128xf32>
    %64 = vector.broadcast %63 : vector<1x1x128xf32> to vector<1x8x128xf32>
    %65 = arith.mulf %61, %64 : vector<1x8x128xf32>
    %66 = arith.addf %58, %65 : vector<1x8x128xf32>
    %c3_i32 = arith.constant 3 : i32
    %67 = tpu.dynamic_rotate %50 by %c3_i32 dim 0 : vector<16x128xf32>, i32 -> vector<16x128xf32>
    %68 = vector.shape_cast %67 : vector<16x128xf32> to vector<1x16x128xf32>
    %69 = vector.extract_strided_slice %68 {offsets = [0, 8, 0], sizes = [1, 8, 128], strides = [1, 1, 1]} : vector<1x16x128xf32> to vector<1x8x128xf32>
    %c16 = arith.constant 16 : index
    %c0_37 = arith.constant 0 : index
    %70 = vector.load %arg12[%c16, %c0_37] : memref<20x128xf32, #tpu.memory_space<vmem>>, vector<1x128xf32>
    %71 = vector.shape_cast %70 : vector<1x128xf32> to vector<1x1x128xf32>
    %72 = vector.broadcast %71 : vector<1x1x128xf32> to vector<1x8x128xf32>
    %73 = arith.mulf %69, %72 : vector<1x8x128xf32>
    %74 = arith.addf %66, %73 : vector<1x8x128xf32>
    %c4_i32 = arith.constant 4 : i32
    %75 = tpu.dynamic_rotate %50 by %c4_i32 dim 0 : vector<16x128xf32>, i32 -> vector<16x128xf32>
    %76 = vector.shape_cast %75 : vector<16x128xf32> to vector<1x16x128xf32>
    %77 = vector.extract_strided_slice %76 {offsets = [0, 8, 0], sizes = [1, 8, 128], strides = [1, 1, 1]} : vector<1x16x128xf32> to vector<1x8x128xf32>
    %c15 = arith.constant 15 : index
    %c0_38 = arith.constant 0 : index
    %78 = vector.load %arg12[%c15, %c0_38] : memref<20x128xf32, #tpu.memory_space<vmem>>, vector<1x128xf32>
    %79 = vector.shape_cast %78 : vector<1x128xf32> to vector<1x1x128xf32>
    %80 = vector.broadcast %79 : vector<1x1x128xf32> to vector<1x8x128xf32>
    %81 = arith.mulf %77, %80 : vector<1x8x128xf32>
    %82 = arith.addf %74, %81 : vector<1x8x128xf32>
    %c5_i32 = arith.constant 5 : i32
    %83 = tpu.dynamic_rotate %50 by %c5_i32 dim 0 : vector<16x128xf32>, i32 -> vector<16x128xf32>
    %84 = vector.shape_cast %83 : vector<16x128xf32> to vector<1x16x128xf32>
    %85 = vector.extract_strided_slice %84 {offsets = [0, 8, 0], sizes = [1, 8, 128], strides = [1, 1, 1]} : vector<1x16x128xf32> to vector<1x8x128xf32>
    %c14 = arith.constant 14 : index
    %c0_39 = arith.constant 0 : index
    %86 = vector.load %arg12[%c14, %c0_39] : memref<20x128xf32, #tpu.memory_space<vmem>>, vector<1x128xf32>
    %87 = vector.shape_cast %86 : vector<1x128xf32> to vector<1x1x128xf32>
    %88 = vector.broadcast %87 : vector<1x1x128xf32> to vector<1x8x128xf32>
    %89 = arith.mulf %85, %88 : vector<1x8x128xf32>
    %90 = arith.addf %82, %89 : vector<1x8x128xf32>
    %c6_i32 = arith.constant 6 : i32
    %91 = tpu.dynamic_rotate %50 by %c6_i32 dim 0 : vector<16x128xf32>, i32 -> vector<16x128xf32>
    %92 = vector.shape_cast %91 : vector<16x128xf32> to vector<1x16x128xf32>
    %93 = vector.extract_strided_slice %92 {offsets = [0, 8, 0], sizes = [1, 8, 128], strides = [1, 1, 1]} : vector<1x16x128xf32> to vector<1x8x128xf32>
    %c13 = arith.constant 13 : index
    %c0_40 = arith.constant 0 : index
    %94 = vector.load %arg12[%c13, %c0_40] : memref<20x128xf32, #tpu.memory_space<vmem>>, vector<1x128xf32>
    %95 = vector.shape_cast %94 : vector<1x128xf32> to vector<1x1x128xf32>
    %96 = vector.broadcast %95 : vector<1x1x128xf32> to vector<1x8x128xf32>
    %97 = arith.mulf %93, %96 : vector<1x8x128xf32>
    %98 = arith.addf %90, %97 : vector<1x8x128xf32>
    %c7_i32 = arith.constant 7 : i32
    %99 = tpu.dynamic_rotate %50 by %c7_i32 dim 0 : vector<16x128xf32>, i32 -> vector<16x128xf32>
    %100 = vector.shape_cast %99 : vector<16x128xf32> to vector<1x16x128xf32>
    %101 = vector.extract_strided_slice %100 {offsets = [0, 8, 0], sizes = [1, 8, 128], strides = [1, 1, 1]} : vector<1x16x128xf32> to vector<1x8x128xf32>
    %c12 = arith.constant 12 : index
    %c0_41 = arith.constant 0 : index
    %102 = vector.load %arg12[%c12, %c0_41] : memref<20x128xf32, #tpu.memory_space<vmem>>, vector<1x128xf32>
    %103 = vector.shape_cast %102 : vector<1x128xf32> to vector<1x1x128xf32>
    %104 = vector.broadcast %103 : vector<1x1x128xf32> to vector<1x8x128xf32>
    %105 = arith.mulf %101, %104 : vector<1x8x128xf32>
    %106 = arith.addf %98, %105 : vector<1x8x128xf32>
    %107 = arith.addf %33, %42 : vector<8x128xf32>
    %108 = vector.shape_cast %106 : vector<1x8x128xf32> to vector<8x128xf32>
    %109 = arith.addf %107, %108 : vector<8x128xf32>
    %110 = arith.mulf %109, %1 : vector<8x128xf32>
    %c0_42 = arith.constant 0 : index
    %c0_43 = arith.constant 0 : index
    %111 = vector.load %arg14[%c0_42, %c0_43] : memref<8x128xf32, #tpu.memory_space<vmem>>, vector<8x128xf32>
    tpu.vector_store %arg14[%c0_42, %c0_43], %110 {strides = array<i32>} : memref<8x128xf32, #tpu.memory_space<vmem>>, vector<8x128xf32>,
    return
  }
  func.func @transform_0(%arg0: i32) -> (i32, i32) {
    %c0_i32 = arith.constant 0 : i32
    %c0_i32_0 = arith.constant 0 : i32
    return %arg0, %c0_i32 : i32, i32
  }
  func.func @transform_1(%arg0: i32) -> (i32, i32) {
    %c0_i32 = arith.constant 0 : i32
    %c0_i32_0 = arith.constant 0 : i32
    return %arg0, %c0_i32 : i32, i32
  }
  func.func @transform_2(%arg0: i32) -> (i32, i32) {
    %c0_i32 = arith.constant 0 : i32
    %c0_i32_0 = arith.constant 0 : i32
    %c0_i32_1 = arith.constant 0 : i32
    return %c0_i32, %c0_i32_0 : i32, i32
  }
  func.func @transform_3(%arg0: i32) -> (i32, i32) {
    %c0_i32 = arith.constant 0 : i32
    %c0_i32_0 = arith.constant 0 : i32
    %c0_i32_1 = arith.constant 0 : i32
    return %c0_i32, %c0_i32_0 : i32, i32
  }
  func.func @transform_4(%arg0: i32) -> (i32, i32) {
    %c0_i32 = arith.constant 0 : i32
    %c0_i32_0 = arith.constant 0 : i32
    %c0_i32_1 = arith.constant 0 : i32
    return %c0_i32, %c0_i32_0 : i32, i32
  }
  func.func @transform_5(%arg0: i32) -> (i32, i32) {
    %c0_i32 = arith.constant 0 : i32
    %c0_i32_0 = arith.constant 0 : i32
    %c0_i32_1 = arith.constant 0 : i32
    return %c0_i32, %c0_i32_0 : i32, i32
  }
  func.func @transform_6(%arg0: i32) -> (i32, i32) {
    %c0_i32 = arith.constant 0 : i32
    %c0_i32_0 = arith.constant 0 : i32
    %c0_i32_1 = arith.constant 0 : i32
    return %c0_i32, %c0_i32_0 : i32, i32
  }
  func.func @transform_7(%arg0: i32) -> (i32, i32) {
    %c0_i32 = arith.constant 0 : i32
    %c0_i32_0 = arith.constant 0 : i32
    %c0_i32_1 = arith.constant 0 : i32
    return %c0_i32, %c0_i32_0 : i32, i32
  }
  func.func @transform_8(%arg0: i32) -> (i32, i32) {
    %c0_i32 = arith.constant 0 : i32
    %c0_i32_0 = arith.constant 0 : i32
    %c0_i32_1 = arith.constant 0 : i32
    return %c0_i32, %c0_i32_0 : i32, i32
  }
  func.func @transform_9(%arg0: i32) -> (i32, i32) {
    %c0_i32 = arith.constant 0 : i32
    %c0_i32_0 = arith.constant 0 : i32
    %c0_i32_1 = arith.constant 0 : i32
    return %c0_i32, %c0_i32_0 : i32, i32
  }
  func.func @transform_10(%arg0: i32) -> (i32, i32) {
    %c0_i32 = arith.constant 0 : i32
    %c0_i32_0 = arith.constant 0 : i32
    %c0_i32_1 = arith.constant 0 : i32
    return %c0_i32, %c0_i32_0 : i32, i32
  }
  func.func @transform_11(%arg0: i32) -> (i32, i32) {
    %c0_i32 = arith.constant 0 : i32
    %c0_i32_0 = arith.constant 0 : i32
    %c0_i32_1 = arith.constant 0 : i32
    return %c0_i32, %c0_i32_0 : i32, i32
  }
  func.func @transform_12(%arg0: i32) -> (i32, i32) {
    %c0_i32 = arith.constant 0 : i32
    %c0_i32_0 = arith.constant 0 : i32
    %c0_i32_1 = arith.constant 0 : i32
    return %c0_i32, %c0_i32_0 : i32, i32
  }
  func.func @transform_13(%arg0: i32) -> (i32, i32) {
    %c0_i32 = arith.constant 0 : i32
    %c0_i32_0 = arith.constant 0 : i32
    return %arg0, %c0_i32 : i32, i32
  }
}

</mosaic_0001>

<llo_original>
// kernel: tpu_custom_call.1
$region0: #{tpu_custom_call.1}
  #allocation0 [shape = 'u32[]', space=smem, size = 0x4, offset = 0x4, fixed_abs, tag = 'smem constant byte address 0x4 - core index']
  #allocation1 [shape = 'u32[72,128]{1,0:T(1,128)}', space=vmem, size = 0x9000, scoped, tag = 'internal scratch']
  %s0 = inlined_call_operand.hbm [shape: f32[16,128], index: 0, kind: input, shape index: {}]
  %s1 = inlined_call_operand.hbm [shape: f32[16,128], index: 1, kind: input, shape index: {}]
  %s2 = inlined_call_operand.hbm [shape: f32[128,256], index: 2, kind: input, shape index: {}]
  %s3 = inlined_call_operand.vmem [shape: f32[1,256], index: 3, kind: input, shape index: {}]
  %s4 = inlined_call_operand.hbm [shape: f32[256,128], index: 4, kind: input, shape index: {}]
  %s5 = inlined_call_operand.hbm [shape: f32[1,128], index: 5, kind: input, shape index: {}]
  %s6 = inlined_call_operand.vmem [shape: f32[1,128], index: 6, kind: input, shape index: {}]
  %s7 = inlined_call_operand.vmem [shape: f32[1,128], index: 7, kind: input, shape index: {}]
  %s8 = inlined_call_operand.hbm [shape: f32[128,256], index: 8, kind: input, shape index: {}]
  %s9 = inlined_call_operand.vmem [shape: f32[1,256], index: 9, kind: input, shape index: {}]
  %s10 = inlined_call_operand.hbm [shape: f32[256,128], index: 10, kind: input, shape index: {}]
  %s11 = inlined_call_operand.hbm [shape: f32[20,128], index: 11, kind: input, shape index: {}]
  %s12 = inlined_call_operand.hbm [shape: f32[128,128], index: 12, kind: input, shape index: {}]
  %s13 = inlined_call_operand.hbm [shape: f32[16,128], index: 13, kind: output, shape index: {}]
  %s14 = sld [smem:[#allocation0]]
  $region121: #{tpu_custom_call.1} parent=0
    _
  %s16 = ssub.s32 1, %s14
  %s17 = scalar_select 0, %s16, %s14
  $region1: #{tpu_custom_call.1} parent=0
    #allocation2 [shape = 'u8[8192]{0}', space=vmem, size = 0x2000, scoped, tag = 'input window, operand 0']
    #allocation3 [shape = 's32[2]{0}', space=sflag, size = 0x8, scoped, tag = 'scoped memory for tpu_custom_call.1']
    #allocation4 [shape = 's32[2]{0}', space=sflag, size = 0x8, scoped, tag = 'scoped memory for tpu_custom_call.1']
    #allocation5 [shape = 'u8[8192]{0}', space=vmem, size = 0x2000, scoped, tag = 'input window, operand 1']
    #allocation6 [shape = 's32[2]{0}', space=sflag, size = 0x8, scoped, tag = 'scoped memory for tpu_custom_call.1']
    #allocation7 [shape = 'u8[131072]{0}', space=vmem, size = 0x20000, scoped, tag = 'input window, operand 2, single buffered']
    #allocation8 [shape = 'u8[131072]{0}', space=vmem, size = 0x20000, scoped, tag = 'input window, operand 4, single buffered']
    #allocation9 [shape = 's32[1]{0}', space=sflag, size = 0x4, scoped, tag = 'scoped memory for tpu_custom_call.1']
    #allocation10 [shape = 'u8[512]{0}', space=vmem, size = 0x400, scoped, tag = 'input window, operand 5, single buffered']
    #allocation11 [shape = 'u8[131072]{0}', space=vmem, size = 0x20000, scoped, tag = 'input window, operand 8, single buffered']
    #allocation12 [shape = 's32[1]{0}', space=sflag, size = 0x4, scoped, tag = 'scoped memory for tpu_custom_call.1']
    #allocation13 [shape = 'u8[131072]{0}', space=vmem, size = 0x20000, scoped, tag = 'input window, operand 10, single buffered']
    #allocation14 [shape = 'u8[12288]{0}', space=vmem, size = 0x3000, scoped, tag = 'input window, operand 11, single buffered']
    #allocation15 [shape = 's32[1]{0}', space=sflag, size = 0x4, scoped, tag = 'scoped memory for tpu_custom_call.1']
    #allocation16 [shape = 'u8[65536]{0}', space=vmem, size = 0x10000, scoped, tag = 'input window, operand 12, single buffered']
    #allocation17 [shape = 'u8[8192]{0}', space=vmem, size = 0x2000, scoped, tag = 'output window, operand 0']
    %18 = vsyncpa [#allocation3], 0
    %s19 = scalar_lea.sflag [#allocation3], 1
    %20 = vsyncpa %s19, 0
    %21 = vsyncpa [#allocation6], 0
    %s22 = scalar_lea.sflag [#allocation6], 1
    %23 = vsyncpa %s22, 0
    %24 = vsyncpa [#allocation9], 0
    %25 = vsyncpa [#allocation12], 0
    %26 = vsyncpa [#allocation15], 0
    %27 = vsyncpa [#allocation4], 0
    %s28 = scalar_lea.sflag [#allocation4], 1
    %29 = vsyncpa %s28, 0
    loop: start=0, step=1, limit=4
    $region2: #{tpu_custom_call.1} parent=1 // loop_pre_header
      _
    $region3: #{tpu_custom_call.1} parent=1 // loop_header
      %s31 = sphi 0, %s35
      %p32 = scmp.ge.s32.totalorder %s31, 4
      %s41 = sphi 0, %s43
      %s44 = sphi 0, %s41
      %s45 = sphi 0, %s44
      %s61 = sphi 0, %s45
      %s67 = sphi 0, %s69
      %s70 = sphi 0, %s67
      %s71 = sphi 0, %s70
      %s87 = sphi 0, %s71
      %s91 = sphi 0, %s91
      %s93 = sphi 0, %s91
      %s94 = sphi 0, %s93
      %s108 = sphi 0, %s94
      %s112 = sphi 0, %s112
      %s114 = sphi 0, %s112
      %s115 = sphi 0, %s114
      %s129 = sphi 0, %s115
      %s133 = sphi 0, %s133
      %s135 = sphi 0, %s133
      %s136 = sphi 0, %s135
      %s150 = sphi 0, %s136
      %s154 = sphi 0, %s154
      %s156 = sphi 0, %s154
      %s157 = sphi 0, %s156
      %s171 = sphi 0, %s157
      %s175 = sphi 0, %s175
      %s177 = sphi 0, %s175
      %s178 = sphi 0, %s177
      %s192 = sphi 0, %s178
      %s196 = sphi 0, %s196
      %s198 = sphi 0, %s196
      %s199 = sphi 0, %s198
      %s213 = sphi 0, %s199
      %s217 = sphi 0, %s217
      %s219 = sphi 0, %s217
      %s220 = sphi 0, %s219
      %s234 = sphi 0, %s220
      %s238 = sphi 0, %s238
      %s240 = sphi 0, %s238
      %s241 = sphi 0, %s240
      %s255 = sphi 0, %s241
      %s259 = sphi 0, %s259
      %s261 = sphi 0, %s259
      %s262 = sphi 0, %s261
      %s276 = sphi 0, %s262
      %s280 = sphi 0, %s280
      %s282 = sphi 0, %s280
      %s283 = sphi 0, %s282
      %s297 = sphi 0, %s283
      %s301 = sphi 0, %s301
      %s303 = sphi 0, %s301
      %s304 = sphi 0, %s303
      %s318 = sphi 0, %s304
      %s324 = sphi 0, %s326
      %s327 = sphi 0, %s324
      %s328 = sphi 0, %s327
      %s344 = sphi 0, %s328
    $region4: #{tpu_custom_call.1} parent=1 // loop_header_branch
      %34 = sbr.rel (%p32) target = $region8
    $region5: #{tpu_custom_call.1} parent=1 // loop_body
      %s36 = ssub.s32 %s31, 1
      %s37 = ssub.s32 %s31, 2
      %s38 = sadd.s32 %s31, 1
      %s39 = ssub.s32 %s31, %s38
      %p40 = scmp.eq.s32.totalorder %s39, 0
      %s42 = sadd.s32 %s41, 1
      %s43 = scalar_select %p40, %s41, %s42
      %p46 = pneg %p40
      %p47 = scmp.eq.s32.totalorder %s31, 1
      %p48 = por %p46, %p47
      %p49 = scmp.ne.s32.totalorder %s41, %s44
      %p50 = scmp.eq.s32.totalorder %s31, 0
      %p51 = por %p49, %p50
      %p52 = scmp.ne.s32.totalorder %s41, %s44
      %p53 = scmp.eq.s32.totalorder %s36, 1
      %p54 = por %p52, %p53
      %p55 = scmp.ne.s32.totalorder %s44, %s45
      %p56 = scmp.eq.s32.totalorder %s36, 0
      %p57 = por %p55, %p56
      %p58 = scmp.ne.s32.totalorder %s44, %s45
      %p59 = scmp.eq.s32.totalorder %s37, 1
      %p60 = por %p58, %p59
      %p62 = scmp.ne.s32.totalorder %s45, %s61
      %p63 = scmp.eq.s32.totalorder %s37, 0
      %p64 = por %p62, %p63
      %s65 = ssub.s32 %s31, %s38
      %p66 = scmp.eq.s32.totalorder %s65, 0
      %s68 = sadd.s32 %s67, 1
      %s69 = scalar_select %p66, %s67, %s68
      %p72 = pneg %p66
      %p73 = scmp.eq.s32.totalorder %s31, 1
      %p74 = por %p72, %p73
      %p75 = scmp.ne.s32.totalorder %s67, %s70
      %p76 = scmp.eq.s32.totalorder %s31, 0
      %p77 = por %p75, %p76
      %p78 = scmp.ne.s32.totalorder %s67, %s70
      %p79 = scmp.eq.s32.totalorder %s36, 1
      %p80 = por %p78, %p79
      %p81 = scmp.ne.s32.totalorder %s70, %s71
      %p82 = scmp.eq.s32.totalorder %s36, 0
      %p83 = por %p81, %p82
      %p84 = scmp.ne.s32.totalorder %s70, %s71
      %p85 = scmp.eq.s32.totalorder %s37, 1
      %p86 = por %p84, %p85
      %p88 = scmp.ne.s32.totalorder %s71, %s87
      %p89 = scmp.eq.s32.totalorder %s37, 0
      %p90 = por %p88, %p89
      %s92 = sadd.s32 %s91, 1
      %p95 = scmp.eq.s32.totalorder %s31, 1
      %p96 = scmp.ne.s32.totalorder %s91, %s93
      %p97 = scmp.eq.s32.totalorder %s31, 0
      %p98 = por %p96, %p97
      %p99 = scmp.ne.s32.totalorder %s91, %s93
      %p100 = scmp.eq.s32.totalorder %s36, 1
      %p101 = por %p99, %p100
      %p102 = scmp.ne.s32.totalorder %s93, %s94
      %p103 = scmp.eq.s32.totalorder %s36, 0
      %p104 = por %p102, %p103
      %p105 = scmp.ne.s32.totalorder %s93, %s94
      %p106 = scmp.eq.s32.totalorder %s37, 1
      %p107 = por %p105, %p106
      %p109 = scmp.ne.s32.totalorder %s94, %s108
      %p110 = scmp.eq.s32.totalorder %s37, 0
      %p111 = por %p109, %p110
      %s113 = sadd.s32 %s112, 1
      %p116 = scmp.eq.s32.totalorder %s31, 1
      %p117 = scmp.ne.s32.totalorder %s112, %s114
      %p118 = scmp.eq.s32.totalorder %s31, 0
      %p119 = por %p117, %p118
      %p120 = scmp.ne.s32.totalorder %s112, %s114
      %p121 = scmp.eq.s32.totalorder %s36, 1
      %p122 = por %p120, %p121
      %p123 = scmp.ne.s32.totalorder %s114, %s115
      %p124 = scmp.eq.s32.totalorder %s36, 0
      %p125 = por %p123, %p124
      %p126 = scmp.ne.s32.totalorder %s114, %s115
      %p127 = scmp.eq.s32.totalorder %s37, 1
      %p128 = por %p126, %p127
      %p130 = scmp.ne.s32.totalorder %s115, %s129
      %p131 = scmp.eq.s32.totalorder %s37, 0
      %p132 = por %p130, %p131
      %s134 = sadd.s32 %s133, 1
      %p137 = scmp.eq.s32.totalorder %s31, 1
      %p138 = scmp.ne.s32.totalorder %s133, %s135
      %p139 = scmp.eq.s32.totalorder %s31, 0
      %p140 = por %p138, %p139
      %p141 = scmp.ne.s32.totalorder %s133, %s135
      %p142 = scmp.eq.s32.totalorder %s36, 1
      %p143 = por %p141, %p142
      %p144 = scmp.ne.s32.totalorder %s135, %s136
      %p145 = scmp.eq.s32.totalorder %s36, 0
      %p146 = por %p144, %p145
      %p147 = scmp.ne.s32.totalorder %s135, %s136
      %p148 = scmp.eq.s32.totalorder %s37, 1
      %p149 = por %p147, %p148
      %p151 = scmp.ne.s32.totalorder %s136, %s150
      %p152 = scmp.eq.s32.totalorder %s37, 0
      %p153 = por %p151, %p152
      %s155 = sadd.s32 %s154, 1
      %p158 = scmp.eq.s32.totalorder %s31, 1
      %p159 = scmp.ne.s32.totalorder %s154, %s156
      %p160 = scmp.eq.s32.totalorder %s31, 0
      %p161 = por %p159, %p160
      %p162 = scmp.ne.s32.totalorder %s154, %s156
      %p163 = scmp.eq.s32.totalorder %s36, 1
      %p164 = por %p162, %p163
      %p165 = scmp.ne.s32.totalorder %s156, %s157
      %p166 = scmp.eq.s32.totalorder %s36, 0
      %p167 = por %p165, %p166
      %p168 = scmp.ne.s32.totalorder %s156, %s157
      %p169 = scmp.eq.s32.totalorder %s37, 1
      %p170 = por %p168, %p169
      %p172 = scmp.ne.s32.totalorder %s157, %s171
      %p173 = scmp.eq.s32.totalorder %s37, 0
      %p174 = por %p172, %p173
      %s176 = sadd.s32 %s175, 1
      %p179 = scmp.eq.s32.totalorder %s31, 1
      %p180 = scmp.ne.s32.totalorder %s175, %s177
      %p181 = scmp.eq.s32.totalorder %s31, 0
      %p182 = por %p180, %p181
      %p183 = scmp.ne.s32.totalorder %s175, %s177
      %p184 = scmp.eq.s32.totalorder %s36, 1
      %p185 = por %p183, %p184
      %p186 = scmp.ne.s32.totalorder %s177, %s178
      %p187 = scmp.eq.s32.totalorder %s36, 0
      %p188 = por %p186, %p187
      %p189 = scmp.ne.s32.totalorder %s177, %s178
      %p190 = scmp.eq.s32.totalorder %s37, 1
      %p191 = por %p189, %p190
      %p193 = scmp.ne.s32.totalorder %s178, %s192
      %p194 = scmp.eq.s32.totalorder %s37, 0
      %p195 = por %p193, %p194
      %s197 = sadd.s32 %s196, 1
      %p200 = scmp.eq.s32.totalorder %s31, 1
      %p201 = scmp.ne.s32.totalorder %s196, %s198
      %p202 = scmp.eq.s32.totalorder %s31, 0
      %p203 = por %p201, %p202
      %p204 = scmp.ne.s32.totalorder %s196, %s198
      %p205 = scmp.eq.s32.totalorder %s36, 1
      %p206 = por %p204, %p205
      %p207 = scmp.ne.s32.totalorder %s198, %s199
      %p208 = scmp.eq.s32.totalorder %s36, 0
      %p209 = por %p207, %p208
      %p210 = scmp.ne.s32.totalorder %s198, %s199
      %p211 = scmp.eq.s32.totalorder %s37, 1
      %p212 = por %p210, %p211
      %p214 = scmp.ne.s32.totalorder %s199, %s213
      %p215 = scmp.eq.s32.totalorder %s37, 0
      %p216 = por %p214, %p215
      %s218 = sadd.s32 %s217, 1
      %p221 = scmp.eq.s32.totalorder %s31, 1
      %p222 = scmp.ne.s32.totalorder %s217, %s219
      %p223 = scmp.eq.s32.totalorder %s31, 0
      %p224 = por %p222, %p223
      %p225 = scmp.ne.s32.totalorder %s217, %s219
      %p226 = scmp.eq.s32.totalorder %s36, 1
      %p227 = por %p225, %p226
      %p228 = scmp.ne.s32.totalorder %s219, %s220
      %p229 = scmp.eq.s32.totalorder %s36, 0
      %p230 = por %p228, %p229
      %p231 = scmp.ne.s32.totalorder %s219, %s220
      %p232 = scmp.eq.s32.totalorder %s37, 1
      %p233 = por %p231, %p232
      %p235 = scmp.ne.s32.totalorder %s220, %s234
      %p236 = scmp.eq.s32.totalorder %s37, 0
      %p237 = por %p235, %p236
      %s239 = sadd.s32 %s238, 1
      %p242 = scmp.eq.s32.totalorder %s31, 1
      %p243 = scmp.ne.s32.totalorder %s238, %s240
      %p244 = scmp.eq.s32.totalorder %s31, 0
      %p245 = por %p243, %p244
      %p246 = scmp.ne.s32.totalorder %s238, %s240
      %p247 = scmp.eq.s32.totalorder %s36, 1
      %p248 = por %p246, %p247
      %p249 = scmp.ne.s32.totalorder %s240, %s241
      %p250 = scmp.eq.s32.totalorder %s36, 0
      %p251 = por %p249, %p250
      %p252 = scmp.ne.s32.totalorder %s240, %s241
      %p253 = scmp.eq.s32.totalorder %s37, 1
      %p254 = por %p252, %p253
      %p256 = scmp.ne.s32.totalorder %s241, %s255
      %p257 = scmp.eq.s32.totalorder %s37, 0
      %p258 = por %p256, %p257
      %s260 = sadd.s32 %s259, 1
      %p263 = scmp.eq.s32.totalorder %s31, 1
      %p264 = scmp.ne.s32.totalorder %s259, %s261
      %p265 = scmp.eq.s32.totalorder %s31, 0
      %p266 = por %p264, %p265
      %p267 = scmp.ne.s32.totalorder %s259, %s261
      %p268 = scmp.eq.s32.totalorder %s36, 1
      %p269 = por %p267, %p268
      %p270 = scmp.ne.s32.totalorder %s261, %s262
      %p271 = scmp.eq.s32.totalorder %s36, 0
      %p272 = por %p270, %p271
      %p273 = scmp.ne.s32.totalorder %s261, %s262
      %p274 = scmp.eq.s32.totalorder %s37, 1
      %p275 = por %p273, %p274
      %p277 = scmp.ne.s32.totalorder %s262, %s276
      %p278 = scmp.eq.s32.totalorder %s37, 0
      %p279 = por %p277, %p278
      %s281 = sadd.s32 %s280, 1
      %p284 = scmp.eq.s32.totalorder %s31, 1
      %p285 = scmp.ne.s32.totalorder %s280, %s282
      %p286 = scmp.eq.s32.totalorder %s31, 0
      %p287 = por %p285, %p286
      %p288 = scmp.ne.s32.totalorder %s280, %s282
      %p289 = scmp.eq.s32.totalorder %s36, 1
      %p290 = por %p288, %p289
      %p291 = scmp.ne.s32.totalorder %s282, %s283
      %p292 = scmp.eq.s32.totalorder %s36, 0
      %p293 = por %p291, %p292
      %p294 = scmp.ne.s32.totalorder %s282, %s283
      %p295 = scmp.eq.s32.totalorder %s37, 1
      %p296 = por %p294, %p295
      %p298 = scmp.ne.s32.totalorder %s283, %s297
      %p299 = scmp.eq.s32.totalorder %s37, 0
      %p300 = por %p298, %p299
      %s302 = sadd.s32 %s301, 1
      %p305 = scmp.eq.s32.totalorder %s31, 1
      %p306 = scmp.ne.s32.totalorder %s301, %s303
      %p307 = scmp.eq.s32.totalorder %s31, 0
      %p308 = por %p306, %p307
      %p309 = scmp.ne.s32.totalorder %s301, %s303
      %p310 = scmp.eq.s32.totalorder %s36, 1
      %p311 = por %p309, %p310
      %p312 = scmp.ne.s32.totalorder %s303, %s304
      %p313 = scmp.eq.s32.totalorder %s36, 0
      %p314 = por %p312, %p313
      %p315 = scmp.ne.s32.totalorder %s303, %s304
      %p316 = scmp.eq.s32.totalorder %s37, 1
      %p317 = por %p315, %p316
      %p319 = scmp.ne.s32.totalorder %s304, %s318
      %p320 = scmp.eq.s32.totalorder %s37, 0
      %p321 = por %p319, %p320
      %s322 = ssub.s32 %s31, %s38
      %p323 = scmp.eq.s32.totalorder %s322, 0
      %s325 = sadd.s32 %s324, 1
      %s326 = scalar_select %p323, %s324, %s325
      %p329 = pneg %p323
      %p330 = scmp.eq.s32.totalorder %s31, 1
      %p331 = por %p329, %p330
      %p332 = scmp.ne.s32.totalorder %s324, %s327
      %p333 = scmp.eq.s32.totalorder %s31, 0
      %p334 = por %p332, %p333
      %p335 = scmp.ne.s32.totalorder %s324, %s327
      %p336 = scmp.eq.s32.totalorder %s36, 1
      %p337 = por %p335, %p336
      %p338 = scmp.ne.s32.totalorder %s327, %s328
      %p339 = scmp.eq.s32.totalorder %s36, 0
      %p340 = por %p338, %p339
      %p341 = scmp.ne.s32.totalorder %s327, %s328
      %p342 = scmp.eq.s32.totalorder %s37, 1
      %p343 = por %p341, %p342
      %p345 = scmp.ne.s32.totalorder %s328, %s344
      %p346 = scmp.eq.s32.totalorder %s37, 0
      %p347 = por %p345, %p346
      %p348 = scmp.le.s32.totalorder 1, %s31
      %p349 = scmp.lt.s32.totalorder %s31, 3
      %p350 = pnand %p348, %p349
      %p351 = pneg %p350
      // Predicated region
      $region9: #{tpu_custom_call.1} parent=5 // pred_check
        _
      $region10: #{tpu_custom_call.1} parent=5 // pred_check_branch
        %353 = sbr.rel (%p350) target = $region12
      $region11: #{tpu_custom_call.1} parent=5 // pred_region
        %s354 = ssub.s32 %s31, 1
        // Predicated region
        $region13: #{tpu_custom_call.1} parent=11 // pred_check
          %p355 = pneg %p104
        $region14: #{tpu_custom_call.1} parent=11 // pred_check_branch
          %357 = sbr.rel (%p355) target = $region16
        $region15: #{tpu_custom_call.1} parent=11 // pred_region
          %359 = vsyncadd [#allocation6], 0
          %s360 = sshll.u32 %s2, 4
          %s361 = int_to_ptr.hbm [resolvable:$true] %s360
          %s362 = sshll.u32 [#allocation7], 4
          %s363 = int_to_ptr.vmem [resolvable:$true] %s362
          %368 = dma.hbm_to_vmem [thread:$0]  %s361, 4096, %s363, [#allocation6], 256, 256, 16
        $region16: #{tpu_custom_call.1} parent=11 // pred_fallthru
          _
        // Predicated region
        $region17: #{tpu_custom_call.1} parent=11 // pred_check
          %p369 = pneg %p125
        $region18: #{tpu_custom_call.1} parent=11 // pred_check_branch
          %371 = sbr.rel (%p369) target = $region20
        $region19: #{tpu_custom_call.1} parent=11 // pred_region
          _
        $region20: #{tpu_custom_call.1} parent=11 // pred_fallthru
          _
        // Predicated region
        $region21: #{tpu_custom_call.1} parent=11 // pred_check
          %p372 = pneg %p146
        $region22: #{tpu_custom_call.1} parent=11 // pred_check_branch
          %374 = sbr.rel (%p372) target = $region24
        $region23: #{tpu_custom_call.1} parent=11 // pred_region
          %376 = vsyncadd [#allocation9], 0
          %s377 = sshll.u32 %s4, 4
          %s378 = int_to_ptr.hbm [resolvable:$true] %s377
          %s379 = sshll.u32 [#allocation8], 4
          %s380 = int_to_ptr.vmem [resolvable:$true] %s379
          %385 = dma.hbm_to_vmem [thread:$0]  %s378, 4096, %s380, [#allocation9], 128, 128, 8
        $region24: #{tpu_custom_call.1} parent=11 // pred_fallthru
          _
        // Predicated region
        $region25: #{tpu_custom_call.1} parent=11 // pred_check
          %p386 = pneg %p167
        $region26: #{tpu_custom_call.1} parent=11 // pred_check_branch
          %388 = sbr.rel (%p386) target = $region28
        $region27: #{tpu_custom_call.1} parent=11 // pred_region
          %390 = vsyncadd [#allocation9], 0
          %s392 = sshll.u32 %s5, 4
          %s393 = int_to_ptr.hbm [resolvable:$true] %s392
          %s394 = sshll.u32 [#allocation10], 4
          %s395 = int_to_ptr.vmem [resolvable:$true] %s394
          %397 = dma.hbm_to_vmem [thread:$0]  %s393, 16, %s395, [#allocation9]
        $region28: #{tpu_custom_call.1} parent=11 // pred_fallthru
          _
        // Predicated region
        $region29: #{tpu_custom_call.1} parent=11 // pred_check
          %p398 = pneg %p188
        $region30: #{tpu_custom_call.1} parent=11 // pred_check_branch
          %400 = sbr.rel (%p398) target = $region32
        $region31: #{tpu_custom_call.1} parent=11 // pred_region
          _
        $region32: #{tpu_custom_call.1} parent=11 // pred_fallthru
          _
        // Predicated region
        $region33: #{tpu_custom_call.1} parent=11 // pred_check
          %p401 = pneg %p209
        $region34: #{tpu_custom_call.1} parent=11 // pred_check_branch
          %403 = sbr.rel (%p401) target = $region36
        $region35: #{tpu_custom_call.1} parent=11 // pred_region
          _
        $region36: #{tpu_custom_call.1} parent=11 // pred_fallthru
          _
        // Predicated region
        $region37: #{tpu_custom_call.1} parent=11 // pred_check
          %p404 = pneg %p230
        $region38: #{tpu_custom_call.1} parent=11 // pred_check_branch
          %406 = sbr.rel (%p404) target = $region40
        $region39: #{tpu_custom_call.1} parent=11 // pred_region
          %408 = vsyncadd [#allocation12], 0
          %s409 = sshll.u32 %s8, 4
          %s410 = int_to_ptr.hbm [resolvable:$true] %s409
          %s411 = sshll.u32 [#allocation11], 4
          %s412 = int_to_ptr.vmem [resolvable:$true] %s411
          %417 = dma.hbm_to_vmem [thread:$0]  %s410, 4096, %s412, [#allocation12], 256, 256, 16
        $region40: #{tpu_custom_call.1} parent=11 // pred_fallthru
          _
        // Predicated region
        $region41: #{tpu_custom_call.1} parent=11 // pred_check
          %p418 = pneg %p251
        $region42: #{tpu_custom_call.1} parent=11 // pred_check_branch
          %420 = sbr.rel (%p418) target = $region44
        $region43: #{tpu_custom_call.1} parent=11 // pred_region
          _
        $region44: #{tpu_custom_call.1} parent=11 // pred_fallthru
          _
        // Predicated region
        $region45: #{tpu_custom_call.1} parent=11 // pred_check
          %p421 = pneg %p272
        $region46: #{tpu_custom_call.1} parent=11 // pred_check_branch
          %423 = sbr.rel (%p421) target = $region48
        $region47: #{tpu_custom_call.1} parent=11 // pred_region
          %425 = vsyncadd [#allocation12], 0
          %s426 = sshll.u32 %s10, 4
          %s427 = int_to_ptr.hbm [resolvable:$true] %s426
          %s428 = sshll.u32 [#allocation13], 4
          %s429 = int_to_ptr.vmem [resolvable:$true] %s428
          %434 = dma.hbm_to_vmem [thread:$0]  %s427, 4096, %s429, [#allocation12], 128, 128, 8
        $region48: #{tpu_custom_call.1} parent=11 // pred_fallthru
          _
        // Predicated region
        $region49: #{tpu_custom_call.1} parent=11 // pred_check
          %p435 = pneg %p293
        $region50: #{tpu_custom_call.1} parent=11 // pred_check_branch
          %437 = sbr.rel (%p435) target = $region52
        $region51: #{tpu_custom_call.1} parent=11 // pred_region
          %439 = vsyncadd [#allocation15], 0
          %s440 = sshll.u32 %s11, 4
          %s441 = int_to_ptr.hbm [resolvable:$true] %s440
          %s442 = sshll.u32 [#allocation14], 4
          %s443 = int_to_ptr.vmem [resolvable:$true] %s442
          %448 = dma.hbm_to_vmem [thread:$0]  %s441, 384, %s443, [#allocation15], 128, 128, 8
        $region52: #{tpu_custom_call.1} parent=11 // pred_fallthru
          _
        // Predicated region
        $region53: #{tpu_custom_call.1} parent=11 // pred_check
          %p449 = pneg %p314
        $region54: #{tpu_custom_call.1} parent=11 // pred_check_branch
          %451 = sbr.rel (%p449) target = $region56
        $region55: #{tpu_custom_call.1} parent=11 // pred_region
          %453 = vsyncadd [#allocation15], 0
          %s454 = sshll.u32 %s12, 4
          %s455 = int_to_ptr.hbm [resolvable:$true] %s454
          %s456 = sshll.u32 [#allocation16], 4
          %s457 = int_to_ptr.vmem [resolvable:$true] %s456
          %462 = dma.hbm_to_vmem [thread:$0]  %s455, 2048, %s457, [#allocation15], 128, 128, 8
        $region56: #{tpu_custom_call.1} parent=11 // pred_fallthru
          _
      $region12: #{tpu_custom_call.1} parent=5 // pred_fallthru
        _
      %p463 = scmp.lt.s32.totalorder %s31, 2
      // Predicated region
      $region57: #{tpu_custom_call.1} parent=5 // pred_check
        %p464 = pneg %p463
      $region58: #{tpu_custom_call.1} parent=5 // pred_check_branch
        %466 = sbr.rel (%p464) target = $region60
      $region59: #{tpu_custom_call.1} parent=5 // pred_region
        // Predicated region
        $region61: #{tpu_custom_call.1} parent=59 // pred_check
          %p467 = pneg %p51
        $region62: #{tpu_custom_call.1} parent=59 // pred_check_branch
          %469 = sbr.rel (%p467) target = $region64
        $region63: #{tpu_custom_call.1} parent=59 // pred_region
          %s470 = sand.u32 %s41, 1
          %s471 = scalar_lea.sflag [#allocation3], %s470
          %s472 = sand.u32 %s41, 1
          %s473 = smul.addr %s472, 8
          %s474 = scalar_lea.vmem [#allocation2], %s473
          %476 = vsyncadd %s471, 0
          %s477 = smul.addr %s31, 8
          %s478 = scalar_lea.hbm %s0, %s477
          %s480 = sshll.u32 %s478, 4
          %s481 = int_to_ptr.hbm [resolvable:$true] %s480
          %s482 = sshll.u32 %s474, 4
          %s483 = int_to_ptr.vmem [resolvable:$true] %s482
          %485 = dma.hbm_to_vmem [thread:$0]  %s481, 128, %s483, %s471
        $region64: #{tpu_custom_call.1} parent=59 // pred_fallthru
          _
        // Predicated region
        $region65: #{tpu_custom_call.1} parent=59 // pred_check
          %p486 = pneg %p77
        $region66: #{tpu_custom_call.1} parent=59 // pred_check_branch
          %488 = sbr.rel (%p486) target = $region68
        $region67: #{tpu_custom_call.1} parent=59 // pred_region
          %s489 = sand.u32 %s31, 1
          %s490 = scalar_lea.sflag [#allocation6], %s489
          %s491 = sand.u32 %s67, 1
          %s492 = smul.addr %s491, 8
          %s493 = scalar_lea.vmem [#allocation5], %s492
          %495 = vsyncadd %s490, 0
          %s496 = smul.addr %s31, 8
          %s497 = scalar_lea.hbm %s1, %s496
          %s499 = sshll.u32 %s497, 4
          %s500 = int_to_ptr.hbm [resolvable:$true] %s499
          %s501 = sshll.u32 %s493, 4
          %s502 = int_to_ptr.vmem [resolvable:$true] %s501
          %504 = dma.hbm_to_vmem [thread:$0]  %s500, 128, %s502, %s490
        $region68: #{tpu_custom_call.1} parent=59 // pred_fallthru
          _
      $region60: #{tpu_custom_call.1} parent=5 // pred_fallthru
        _
      %p505 = scmp.le.s32.totalorder 1, %s31
      %p506 = scmp.lt.s32.totalorder %s31, 3
      %p507 = pnand %p505, %p506
      %p508 = pneg %p507
      // Predicated region
      $region69: #{tpu_custom_call.1} parent=5 // pred_check
        _
      $region70: #{tpu_custom_call.1} parent=5 // pred_check_branch
        %510 = sbr.rel (%p507) target = $region72
      $region71: #{tpu_custom_call.1} parent=5 // pred_region
        %s511 = ssub.s32 %s31, 1
        %s512 = sand.u32 %s44, 1
        %s513 = scalar_lea.sflag [#allocation3], %s512
        %s514 = sand.u32 %s44, 1
        %s515 = smul.addr %s514, 8
        %s516 = scalar_lea.vmem [#allocation2], %s515
        // Predicated region
        $region73: #{tpu_custom_call.1} parent=71 // pred_check
          %p517 = pneg %p57
        $region74: #{tpu_custom_call.1} parent=71 // pred_check_branch
          %519 = sbr.rel (%p517) target = $region76
        $region75: #{tpu_custom_call.1} parent=71 // pred_region
          %521 = dma.done %s513, 128
        $region76: #{tpu_custom_call.1} parent=71 // pred_fallthru
          _
        %s522 = sand.u32 %s36, 1
        %s523 = scalar_lea.sflag [#allocation6], %s522
        %s524 = sand.u32 %s70, 1
        %s525 = smul.addr %s524, 8
        %s526 = scalar_lea.vmem [#allocation5], %s525
        // Predicated region
        $region77: #{tpu_custom_call.1} parent=71 // pred_check
          %p527 = pneg %p83
        $region78: #{tpu_custom_call.1} parent=71 // pred_check_branch
          %529 = sbr.rel (%p527) target = $region80
        $region79: #{tpu_custom_call.1} parent=71 // pred_region
          %531 = dma.done %s523, 128
        $region80: #{tpu_custom_call.1} parent=71 // pred_fallthru
          _
        // Predicated region
        $region81: #{tpu_custom_call.1} parent=71 // pred_check
          %p532 = pneg %p104
        $region82: #{tpu_custom_call.1} parent=71 // pred_check_branch
          %534 = sbr.rel (%p532) target = $region84
        $region83: #{tpu_custom_call.1} parent=71 // pred_region
          %536 = dma.done [#allocation6], 4096
        $region84: #{tpu_custom_call.1} parent=71 // pred_fallthru
          _
        // Predicated region
        $region85: #{tpu_custom_call.1} parent=71 // pred_check
          %p537 = pneg %p146
        $region86: #{tpu_custom_call.1} parent=71 // pred_check_branch
          %539 = sbr.rel (%p537) target = $region88
        $region87: #{tpu_custom_call.1} parent=71 // pred_region
          %541 = dma.done [#allocation9], 4096
        $region88: #{tpu_custom_call.1} parent=71 // pred_fallthru
          _
        // Predicated region
        $region89: #{tpu_custom_call.1} parent=71 // pred_check
          %p542 = pneg %p167
        $region90: #{tpu_custom_call.1} parent=71 // pred_check_branch
          %544 = sbr.rel (%p542) target = $region92
        $region91: #{tpu_custom_call.1} parent=71 // pred_region
          %546 = dma.done [#allocation9], 16
        $region92: #{tpu_custom_call.1} parent=71 // pred_fallthru
          _
        // Predicated region
        $region93: #{tpu_custom_call.1} parent=71 // pred_check
          %p547 = pneg %p230
        $region94: #{tpu_custom_call.1} parent=71 // pred_check_branch
          %549 = sbr.rel (%p547) target = $region96
        $region95: #{tpu_custom_call.1} parent=71 // pred_region
          %551 = dma.done [#allocation12], 4096
        $region96: #{tpu_custom_call.1} parent=71 // pred_fallthru
          _
        // Predicated region
        $region97: #{tpu_custom_call.1} parent=71 // pred_check
          %p552 = pneg %p272
        $region98: #{tpu_custom_call.1} parent=71 // pred_check_branch
          %554 = sbr.rel (%p552) target = $region100
        $region99: #{tpu_custom_call.1} parent=71 // pred_region
          %556 = dma.done [#allocation12], 4096
        $region100: #{tpu_custom_call.1} parent=71 // pred_fallthru
          _
        // Predicated region
        $region101: #{tpu_custom_call.1} parent=71 // pred_check
          %p557 = pneg %p293
        $region102: #{tpu_custom_call.1} parent=71 // pred_check_branch
          %559 = sbr.rel (%p557) target = $region104
        $region103: #{tpu_custom_call.1} parent=71 // pred_region
          %561 = dma.done [#allocation15], 384
        $region104: #{tpu_custom_call.1} parent=71 // pred_fallthru
          _
        // Predicated region
        $region105: #{tpu_custom_call.1} parent=71 // pred_check
          %p562 = pneg %p314
        $region106: #{tpu_custom_call.1} parent=71 // pred_check_branch
          %564 = sbr.rel (%p562) target = $region108
        $region107: #{tpu_custom_call.1} parent=71 // pred_region
          %566 = dma.done [#allocation15], 2048
        $region108: #{tpu_custom_call.1} parent=71 // pred_fallthru
          _
        %s567 = sand.u32 %s44, 1
        %s568 = scalar_lea.sflag [#allocation3], %s567
        %s569 = sand.u32 %s44, 1
        %s570 = smul.addr %s569, 8
        %s571 = scalar_lea.vmem [#allocation2], %s570
        %p572 = pneg %p57
        %p573 = pneg %p54
        %s574 = sand.u32 %s36, 1
        %s575 = scalar_lea.sflag [#allocation6], %s574
        %s576 = sand.u32 %s70, 1
        %s577 = smul.addr %s576, 8
        %s578 = scalar_lea.vmem [#allocation5], %s577
        %p579 = pneg %p83
        %p580 = pneg %p80
        %p581 = pneg %p104
        %p582 = pneg %p101
        %p583 = pneg %p125
        %p584 = pneg %p122
        %p585 = pneg %p146
        %p586 = pneg %p143
        %p587 = pneg %p167
        %p588 = pneg %p164
        %p589 = pneg %p188
        %p590 = pneg %p185
        %p591 = pneg %p209
        %p592 = pneg %p206
        %p593 = pneg %p230
        %p594 = pneg %p227
        %p595 = pneg %p251
        %p596 = pneg %p248
        %p597 = pneg %p272
        %p598 = pneg %p269
        %p599 = pneg %p293
        %p600 = pneg %p290
        %p601 = pneg %p314
        %p602 = pneg %p311
        %p603 = pneg %p340
        %p604 = pneg %p337
        %s605 = sand.u32 %s327, 1
        %s606 = scalar_lea.sflag [#allocation4], %s605
        %s607 = sand.u32 %s327, 1
        %s608 = smul.addr %s607, 8
        %s609 = scalar_lea.vmem [#allocation17], %s608
        %v610 = vld [vmem:[%s516] sm:$0xff]
        %v611 = vld [vmem:[%s526] sm:$0xff]
        %v612 = vld [vmem:[#allocation7] sm:$0xff]
        %v613 = vld [vmem:[#allocation7 + $0x8] sm:$0xff]
        %v614 = vld [vmem:[#allocation7 + $0x10] sm:$0xff]
        %v615 = vld [vmem:[#allocation7 + $0x18] sm:$0xff]
        %v616 = vld [vmem:[#allocation7 + $0x20] sm:$0xff]
        %v617 = vld [vmem:[#allocation7 + $0x28] sm:$0xff]
        %v618 = vld [vmem:[#allocation7 + $0x30] sm:$0xff]
        %v619 = vld [vmem:[#allocation7 + $0x38] sm:$0xff]
        %v620 = vld [vmem:[#allocation7 + $0x40] sm:$0xff]
        %v621 = vld [vmem:[#allocation7 + $0x48] sm:$0xff]
        %v622 = vld [vmem:[#allocation7 + $0x50] sm:$0xff]
        %v623 = vld [vmem:[#allocation7 + $0x58] sm:$0xff]
        %v624 = vld [vmem:[#allocation7 + $0x60] sm:$0xff]
        %v625 = vld [vmem:[#allocation7 + $0x68] sm:$0xff]
        %v626 = vld [vmem:[#allocation7 + $0x70] sm:$0xff]
        %v627 = vld [vmem:[#allocation7 + $0x78] sm:$0xff]
        %v628 = vld [vmem:[#allocation7 + $0x80] sm:$0xff]
        %v629 = vld [vmem:[#allocation7 + $0x88] sm:$0xff]
        %v630 = vld [vmem:[#allocation7 + $0x90] sm:$0xff]
        %v631 = vld [vmem:[#allocation7 + $0x98] sm:$0xff]
        %v632 = vld [vmem:[#allocation7 + $0xa0] sm:$0xff]
        %v633 = vld [vmem:[#allocation7 + $0xa8] sm:$0xff]
        %v634 = vld [vmem:[#allocation7 + $0xb0] sm:$0xff]
        %v635 = vld [vmem:[#allocation7 + $0xb8] sm:$0xff]
        %v636 = vld [vmem:[#allocation7 + $0xc0] sm:$0xff]
        %v637 = vld [vmem:[#allocation7 + $0xc8] sm:$0xff]
        %v638 = vld [vmem:[#allocation7 + $0xd0] sm:$0xff]
        %v639 = vld [vmem:[#allocation7 + $0xd8] sm:$0xff]
        %v640 = vld [vmem:[#allocation7 + $0xe0] sm:$0xff]
        %v641 = vld [vmem:[#allocation7 + $0xe8] sm:$0xff]
        %v642 = vld [vmem:[#allocation7 + $0xf0] sm:$0xff]
        %v643 = vld [vmem:[#allocation7 + $0xf8] sm:$0xff]
        %v644 = vld [vmem:[%s3] sm:$0x3]
        %v646 = vperm.slane %v644, 0
        %v647 = vperm.slane %v644, 1
        %650 = vmatpush.msra.mxu0 %v642
        %651 = vmatpush.msra.mxu0 %v640
        %652 = vmatpush.msra.mxu0 %v638
        %653 = vmatpush.msra.mxu0 %v636
        %654 = vmatpush.msra.mxu0 %v634
        %655 = vmatpush.msra.mxu0 %v632
        %656 = vmatpush.msra.mxu0 %v630
        %657 = vmatpush.msra.mxu0 %v628
        %658 = vmatpush.msra.mxu0 %v626
        %659 = vmatpush.msra.mxu0 %v624
        %660 = vmatpush.msra.mxu0 %v622
        %661 = vmatpush.msra.mxu0 %v620
        %662 = vmatpush.msra.mxu0 %v618
        %663 = vmatpush.msra.mxu0 %v616
        %664 = vmatpush.msra.mxu0 %v614
        %665 = vmatpush.msra.mxu0 %v612
        %666 = vmatmul.f32.gmra.mxu0 %v610
        %v667 = vpop.f32.mrf.mxu0
        %v668 = vadd.f32 %v646, %v667
        %669 = vdwg.mxu0
        %670 = vmatpush.msra.mxu0 %v643
        %671 = vmatpush.msra.mxu0 %v641
        %672 = vmatpush.msra.mxu0 %v639
        %673 = vmatpush.msra.mxu0 %v637
        %674 = vmatpush.msra.mxu0 %v635
        %675 = vmatpush.msra.mxu0 %v633
        %676 = vmatpush.msra.mxu0 %v631
        %677 = vmatpush.msra.mxu0 %v629
        %678 = vmatpush.msra.mxu0 %v627
        %679 = vmatpush.msra.mxu0 %v625
        %680 = vmatpush.msra.mxu0 %v623
        %681 = vmatpush.msra.mxu0 %v621
        %682 = vmatpush.msra.mxu0 %v619
        %683 = vmatpush.msra.mxu0 %v617
        %684 = vmatpush.msra.mxu0 %v615
        %685 = vmatpush.msra.mxu0 %v613
        %686 = vmatmul.f32.gmra.mxu0 %v610
        %v687 = vpop.f32.mrf.mxu0
        %v688 = vadd.f32 %v647, %v687
        %689 = vdwg.mxu0
        %v690 = vmax.f32 %v668, 0.0
        %v691 = vmax.f32 %v688, 0.0
        %v692 = vld [vmem:[#allocation8] sm:$0xff]
        %v693 = vld [vmem:[#allocation8 + $0x8] sm:$0xff]
        %v694 = vld [vmem:[#allocation8 + $0x10] sm:$0xff]
        %v695 = vld [vmem:[#allocation8 + $0x18] sm:$0xff]
        %v696 = vld [vmem:[#allocation8 + $0x20] sm:$0xff]
        %v697 = vld [vmem:[#allocation8 + $0x28] sm:$0xff]
        %v698 = vld [vmem:[#allocation8 + $0x30] sm:$0xff]
        %v699 = vld [vmem:[#allocation8 + $0x38] sm:$0xff]
        %v700 = vld [vmem:[#allocation8 + $0x40] sm:$0xff]
        %v701 = vld [vmem:[#allocation8 + $0x48] sm:$0xff]
        %v702 = vld [vmem:[#allocation8 + $0x50] sm:$0xff]
        %v703 = vld [vmem:[#allocation8 + $0x58] sm:$0xff]
        %v704 = vld [vmem:[#allocation8 + $0x60] sm:$0xff]
        %v705 = vld [vmem:[#allocation8 + $0x68] sm:$0xff]
        %v706 = vld [vmem:[#allocation8 + $0x70] sm:$0xff]
        %v707 = vld [vmem:[#allocation8 + $0x78] sm:$0xff]
        %v708 = vld [vmem:[#allocation8 + $0x80] sm:$0xff]
        %v709 = vld [vmem:[#allocation8 + $0x88] sm:$0xff]
        %v710 = vld [vmem:[#allocation8 + $0x90] sm:$0xff]
        %v711 = vld [vmem:[#allocation8 + $0x98] sm:$0xff]
        %v712 = vld [vmem:[#allocation8 + $0xa0] sm:$0xff]
        %v713 = vld [vmem:[#allocation8 + $0xa8] sm:$0xff]
        %v714 = vld [vmem:[#allocation8 + $0xb0] sm:$0xff]
        %v715 = vld [vmem:[#allocation8 + $0xb8] sm:$0xff]
        %v716 = vld [vmem:[#allocation8 + $0xc0] sm:$0xff]
        %v717 = vld [vmem:[#allocation8 + $0xc8] sm:$0xff]
        %v718 = vld [vmem:[#allocation8 + $0xd0] sm:$0xff]
        %v719 = vld [vmem:[#allocation8 + $0xd8] sm:$0xff]
        %v720 = vld [vmem:[#allocation8 + $0xe0] sm:$0xff]
        %v721 = vld [vmem:[#allocation8 + $0xe8] sm:$0xff]
        %v722 = vld [vmem:[#allocation8 + $0xf0] sm:$0xff]
        %v723 = vld [vmem:[#allocation8 + $0xf8] sm:$0xff]
        %v724 = vld [vmem:[#allocation10] sm:$0x1]
        %v726 = vperm.slane %v724, 0
        %728 = vmatpush.msra.mxu0 %v707
        %729 = vmatpush.msra.mxu0 %v706
        %730 = vmatpush.msra.mxu0 %v705
        %731 = vmatpush.msra.mxu0 %v704
        %732 = vmatpush.msra.mxu0 %v703
        %733 = vmatpush.msra.mxu0 %v702
        %734 = vmatpush.msra.mxu0 %v701
        %735 = vmatpush.msra.mxu0 %v700
        %736 = vmatpush.msra.mxu0 %v699
        %737 = vmatpush.msra.mxu0 %v698
        %738 = vmatpush.msra.mxu0 %v697
        %739 = vmatpush.msra.mxu0 %v696
        %740 = vmatpush.msra.mxu0 %v695
        %741 = vmatpush.msra.mxu0 %v694
        %742 = vmatpush.msra.mxu0 %v693
        %743 = vmatpush.msra.mxu0 %v692
        %744 = vmatmul.f32.gmra.mxu0 %v690
        %v745 = vpop.f32.mrf.mxu0
        %v746 = vadd.f32 %v726, %v745
        %747 = vdwg.mxu0
        %748 = vmatpush.msra.mxu0 %v723
        %749 = vmatpush.msra.mxu0 %v722
        %750 = vmatpush.msra.mxu0 %v721
        %751 = vmatpush.msra.mxu0 %v720
        %752 = vmatpush.msra.mxu0 %v719
        %753 = vmatpush.msra.mxu0 %v718
        %754 = vmatpush.msra.mxu0 %v717
        %755 = vmatpush.msra.mxu0 %v716
        %756 = vmatpush.msra.mxu0 %v715
        %757 = vmatpush.msra.mxu0 %v714
        %758 = vmatpush.msra.mxu0 %v713
        %759 = vmatpush.msra.mxu0 %v712
        %760 = vmatpush.msra.mxu0 %v711
        %761 = vmatpush.msra.mxu0 %v710
        %762 = vmatpush.msra.mxu0 %v709
        %763 = vmatpush.msra.mxu0 %v708
        %764 = vmatmul.f32.gmra.mxu0 %v691
        %v765 = vpop.f32.mrf.mxu0
        %v766 = vadd.f32 %v746, %v765
        %767 = vdwg.mxu0
        %v768 = vadd.f32 %v766, %v610
        %v769 = vld [vmem:[#allocation16] sm:$0xff]
        %v770 = vld [vmem:[#allocation16 + $0x8] sm:$0xff]
        %v771 = vld [vmem:[#allocation16 + $0x10] sm:$0xff]
        %v772 = vld [vmem:[#allocation16 + $0x18] sm:$0xff]
        %v773 = vld [vmem:[#allocation16 + $0x20] sm:$0xff]
        %v774 = vld [vmem:[#allocation16 + $0x28] sm:$0xff]
        %v775 = vld [vmem:[#allocation16 + $0x30] sm:$0xff]
        %v776 = vld [vmem:[#allocation16 + $0x38] sm:$0xff]
        %v777 = vld [vmem:[#allocation16 + $0x40] sm:$0xff]
        %v778 = vld [vmem:[#allocation16 + $0x48] sm:$0xff]
        %v779 = vld [vmem:[#allocation16 + $0x50] sm:$0xff]
        %v780 = vld [vmem:[#allocation16 + $0x58] sm:$0xff]
        %v781 = vld [vmem:[#allocation16 + $0x60] sm:$0xff]
        %v782 = vld [vmem:[#allocation16 + $0x68] sm:$0xff]
        %v783 = vld [vmem:[#allocation16 + $0x70] sm:$0xff]
        %v784 = vld [vmem:[#allocation16 + $0x78] sm:$0xff]
        %785 = vmatpush.msra.mxu0 %v784
        %786 = vmatpush.msra.mxu0 %v783
        %787 = vmatpush.msra.mxu0 %v782
        %788 = vmatpush.msra.mxu0 %v781
        %789 = vmatpush.msra.mxu0 %v780
        %790 = vmatpush.msra.mxu0 %v779
        %791 = vmatpush.msra.mxu0 %v778
        %792 = vmatpush.msra.mxu0 %v777
        %793 = vmatpush.msra.mxu0 %v776
        %794 = vmatpush.msra.mxu0 %v775
        %795 = vmatpush.msra.mxu0 %v774
        %796 = vmatpush.msra.mxu0 %v773
        %797 = vmatpush.msra.mxu0 %v772
        %798 = vmatpush.msra.mxu0 %v771
        %799 = vmatpush.msra.mxu0 %v770
        %800 = vmatpush.msra.mxu0 %v769
        %801 = vmatmul.f32.gmra.mxu0 %v768
        %v802 = vpop.f32.mrf.mxu0
        %v803 = vadd.f32 0.0, %v802
        %804 = vdwg.mxu0
        %v805 = vmul.f32 %v768, %v768
        %806 = vmatpush.msra.mxu0 %v784
        %807 = vmatpush.msra.mxu0 %v783
        %808 = vmatpush.msra.mxu0 %v782
        %809 = vmatpush.msra.mxu0 %v781
        %810 = vmatpush.msra.mxu0 %v780
        %811 = vmatpush.msra.mxu0 %v779
        %812 = vmatpush.msra.mxu0 %v778
        %813 = vmatpush.msra.mxu0 %v777
        %814 = vmatpush.msra.mxu0 %v776
        %815 = vmatpush.msra.mxu0 %v775
        %816 = vmatpush.msra.mxu0 %v774
        %817 = vmatpush.msra.mxu0 %v773
        %818 = vmatpush.msra.mxu0 %v772
        %819 = vmatpush.msra.mxu0 %v771
        %820 = vmatpush.msra.mxu0 %v770
        %821 = vmatpush.msra.mxu0 %v769
        %822 = vmatmul.f32.gmra.mxu0 %v805
        %v823 = vpop.f32.mrf.mxu0
        %v824 = vadd.f32 0.0, %v823
        %825 = vdwg.mxu0
        %v826 = vmul.f32 %v803, %v803
        %v827 = vsub.f32 %v824, %v826
        %v828 = vsub.f32 %v768, %v803
        %v829 = vadd.f32 %v827, 1e-05
        %v830 = vrsqrt.pop %v829
        %v831 = vmul.f32 %v830, %v829
        %v832 = vmul.f32 %v831, %v830
        %v833 = vmul.f32 0.5, %v832
        %v834 = vsub.f32 1.5, %v833
        %v835 = vmul.f32 %v830, %v834
        %vm836 = vweird.f32 %v829
        %vm837 = vweird.f32 %v830
        %vm838 = vmor %vm836, %vm837
        %v839 = vsel %vm838, %v830, %v835
        %v840 = vmul.f32 %v828, %v839
        %v841 = vld [vmem:[%s6] sm:$0x1]
        %v843 = vperm.slane %v841, 0
        %v845 = vmul.f32 %v840, %v843
        %v846 = vld [vmem:[%s7] sm:$0x1]
        %v848 = vperm.slane %v846, 0
        %v850 = vadd.f32 %v845, %v848
        %v851 = vmul.f32 %v850, %v611
        %v852 = vld [vmem:[#allocation11] sm:$0xff]
        %v853 = vld [vmem:[#allocation11 + $0x8] sm:$0xff]
        %v854 = vld [vmem:[#allocation11 + $0x10] sm:$0xff]
        %v855 = vld [vmem:[#allocation11 + $0x18] sm:$0xff]
        %v856 = vld [vmem:[#allocation11 + $0x20] sm:$0xff]
        %v857 = vld [vmem:[#allocation11 + $0x28] sm:$0xff]
        %v858 = vld [vmem:[#allocation11 + $0x30] sm:$0xff]
        %v859 = vld [vmem:[#allocation11 + $0x38] sm:$0xff]
        %v860 = vld [vmem:[#allocation11 + $0x40] sm:$0xff]
        %v861 = vld [vmem:[#allocation11 + $0x48] sm:$0xff]
        %v862 = vld [vmem:[#allocation11 + $0x50] sm:$0xff]
        %v863 = vld [vmem:[#allocation11 + $0x58] sm:$0xff]
        %v864 = vld [vmem:[#allocation11 + $0x60] sm:$0xff]
        %v865 = vld [vmem:[#allocation11 + $0x68] sm:$0xff]
        %v866 = vld [vmem:[#allocation11 + $0x70] sm:$0xff]
        %v867 = vld [vmem:[#allocation11 + $0x78] sm:$0xff]
        %v868 = vld [vmem:[#allocation11 + $0x80] sm:$0xff]
        %v869 = vld [vmem:[#allocation11 + $0x88] sm:$0xff]
        %v870 = vld [vmem:[#allocation11 + $0x90] sm:$0xff]
        %v871 = vld [vmem:[#allocation11 + $0x98] sm:$0xff]
        %v872 = vld [vmem:[#allocation11 + $0xa0] sm:$0xff]
        %v873 = vld [vmem:[#allocation11 + $0xa8] sm:$0xff]
        %v874 = vld [vmem:[#allocation11 + $0xb0] sm:$0xff]
        %v875 = vld [vmem:[#allocation11 + $0xb8] sm:$0xff]
        %v876 = vld [vmem:[#allocation11 + $0xc0] sm:$0xff]
        %v877 = vld [vmem:[#allocation11 + $0xc8] sm:$0xff]
        %v878 = vld [vmem:[#allocation11 + $0xd0] sm:$0xff]
        %v879 = vld [vmem:[#allocation11 + $0xd8] sm:$0xff]
        %v880 = vld [vmem:[#allocation11 + $0xe0] sm:$0xff]
        %v881 = vld [vmem:[#allocation11 + $0xe8] sm:$0xff]
        %v882 = vld [vmem:[#allocation11 + $0xf0] sm:$0xff]
        %v883 = vld [vmem:[#allocation11 + $0xf8] sm:$0xff]
        %v884 = vld [vmem:[%s9] sm:$0x3]
        %v886 = vperm.slane %v884, 0
        %v887 = vperm.slane %v884, 1
        %890 = vmatpush.msra.mxu0 %v882
        %891 = vmatpush.msra.mxu0 %v880
        %892 = vmatpush.msra.mxu0 %v878
        %893 = vmatpush.msra.mxu0 %v876
        %894 = vmatpush.msra.mxu0 %v874
        %895 = vmatpush.msra.mxu0 %v872
        %896 = vmatpush.msra.mxu0 %v870
        %897 = vmatpush.msra.mxu0 %v868
        %898 = vmatpush.msra.mxu0 %v866
        %899 = vmatpush.msra.mxu0 %v864
        %900 = vmatpush.msra.mxu0 %v862
        %901 = vmatpush.msra.mxu0 %v860
        %902 = vmatpush.msra.mxu0 %v858
        %903 = vmatpush.msra.mxu0 %v856
        %904 = vmatpush.msra.mxu0 %v854
        %905 = vmatpush.msra.mxu0 %v852
        %906 = vmatmul.f32.gmra.mxu0 %v851
        %v907 = vpop.f32.mrf.mxu0
        %v908 = vadd.f32 %v886, %v907
        %909 = vdwg.mxu0
        %910 = vmatpush.msra.mxu0 %v883
        %911 = vmatpush.msra.mxu0 %v881
        %912 = vmatpush.msra.mxu0 %v879
        %913 = vmatpush.msra.mxu0 %v877
        %914 = vmatpush.msra.mxu0 %v875
        %915 = vmatpush.msra.mxu0 %v873
        %916 = vmatpush.msra.mxu0 %v871
        %917 = vmatpush.msra.mxu0 %v869
        %918 = vmatpush.msra.mxu0 %v867
        %919 = vmatpush.msra.mxu0 %v865
        %920 = vmatpush.msra.mxu0 %v863
        %921 = vmatpush.msra.mxu0 %v861
        %922 = vmatpush.msra.mxu0 %v859
        %923 = vmatpush.msra.mxu0 %v857
        %924 = vmatpush.msra.mxu0 %v855
        %925 = vmatpush.msra.mxu0 %v853
        %926 = vmatmul.f32.gmra.mxu0 %v851
        %v927 = vpop.f32.mrf.mxu0
        %v928 = vadd.f32 %v887, %v927
        %929 = vdwg.mxu0
        %v930 = vmax.f32 %v908, 0.0
        %v931 = vmax.f32 %v928, 0.0
        %v932 = vld [vmem:[#allocation13] sm:$0xff]
        %v933 = vld [vmem:[#allocation13 + $0x8] sm:$0xff]
        %v934 = vld [vmem:[#allocation13 + $0x10] sm:$0xff]
        %v935 = vld [vmem:[#allocation13 + $0x18] sm:$0xff]
        %v936 = vld [vmem:[#allocation13 + $0x20] sm:$0xff]
        %v937 = vld [vmem:[#allocation13 + $0x28] sm:$0xff]
        %v938 = vld [vmem:[#allocation13 + $0x30] sm:$0xff]
        %v939 = vld [vmem:[#allocation13 + $0x38] sm:$0xff]
        %v940 = vld [vmem:[#allocation13 + $0x40] sm:$0xff]
        %v941 = vld [vmem:[#allocation13 + $0x48] sm:$0xff]
        %v942 = vld [vmem:[#allocation13 + $0x50] sm:$0xff]
        %v943 = vld [vmem:[#allocation13 + $0x58] sm:$0xff]
        %v944 = vld [vmem:[#allocation13 + $0x60] sm:$0xff]
        %v945 = vld [vmem:[#allocation13 + $0x68] sm:$0xff]
        %v946 = vld [vmem:[#allocation13 + $0x70] sm:$0xff]
        %v947 = vld [vmem:[#allocation13 + $0x78] sm:$0xff]
        %v948 = vld [vmem:[#allocation13 + $0x80] sm:$0xff]
        %v949 = vld [vmem:[#allocation13 + $0x88] sm:$0xff]
        %v950 = vld [vmem:[#allocation13 + $0x90] sm:$0xff]
        %v951 = vld [vmem:[#allocation13 + $0x98] sm:$0xff]
        %v952 = vld [vmem:[#allocation13 + $0xa0] sm:$0xff]
        %v953 = vld [vmem:[#allocation13 + $0xa8] sm:$0xff]
        %v954 = vld [vmem:[#allocation13 + $0xb0] sm:$0xff]
        %v955 = vld [vmem:[#allocation13 + $0xb8] sm:$0xff]
        %v956 = vld [vmem:[#allocation13 + $0xc0] sm:$0xff]
        %v957 = vld [vmem:[#allocation13 + $0xc8] sm:$0xff]
        %v958 = vld [vmem:[#allocation13 + $0xd0] sm:$0xff]
        %v959 = vld [vmem:[#allocation13 + $0xd8] sm:$0xff]
        %v960 = vld [vmem:[#allocation13 + $0xe0] sm:$0xff]
        %v961 = vld [vmem:[#allocation13 + $0xe8] sm:$0xff]
        %v962 = vld [vmem:[#allocation13 + $0xf0] sm:$0xff]
        %v963 = vld [vmem:[#allocation13 + $0xf8] sm:$0xff]
        %964 = vmatpush.msra.mxu0 %v947
        %965 = vmatpush.msra.mxu0 %v946
        %966 = vmatpush.msra.mxu0 %v945
        %967 = vmatpush.msra.mxu0 %v944
        %968 = vmatpush.msra.mxu0 %v943
        %969 = vmatpush.msra.mxu0 %v942
        %970 = vmatpush.msra.mxu0 %v941
        %971 = vmatpush.msra.mxu0 %v940
        %972 = vmatpush.msra.mxu0 %v939
        %973 = vmatpush.msra.mxu0 %v938
        %974 = vmatpush.msra.mxu0 %v937
        %975 = vmatpush.msra.mxu0 %v936
        %976 = vmatpush.msra.mxu0 %v935
        %977 = vmatpush.msra.mxu0 %v934
        %978 = vmatpush.msra.mxu0 %v933
        %979 = vmatpush.msra.mxu0 %v932
        %980 = vmatmul.f32.gmra.mxu0 %v930
        %v981 = vpop.f32.mrf.mxu0
        %v982 = vadd.f32 0.0, %v981
        %983 = vdwg.mxu0
        %984 = vmatpush.msra.mxu0 %v963
        %985 = vmatpush.msra.mxu0 %v962
        %986 = vmatpush.msra.mxu0 %v961
        %987 = vmatpush.msra.mxu0 %v960
        %988 = vmatpush.msra.mxu0 %v959
        %989 = vmatpush.msra.mxu0 %v958
        %990 = vmatpush.msra.mxu0 %v957
        %991 = vmatpush.msra.mxu0 %v956
        %992 = vmatpush.msra.mxu0 %v955
        %993 = vmatpush.msra.mxu0 %v954
        %994 = vmatpush.msra.mxu0 %v953
        %995 = vmatpush.msra.mxu0 %v952
        %996 = vmatpush.msra.mxu0 %v951
        %997 = vmatpush.msra.mxu0 %v950
        %998 = vmatpush.msra.mxu0 %v949
        %999 = vmatpush.msra.mxu0 %v948
        %1000 = vmatmul.f32.gmra.mxu0 %v931
        %v1001 = vpop.f32.mrf.mxu0
        %v1002 = vadd.f32 %v982, %v1001
        %1003 = vdwg.mxu0
        %v1004 = vld [vmem:[#allocation14 + $0x13] sm:$0x1]
        %v1005 = vperm.slane %v1004, 0
        %v1006 = vmul.f32 %v1002, %v1005
        %v1007 = vrot.slane %v1002, 7
        %v1008 = vlaneseq
        %v1009 = vshrl.u32 %v1008, 7
        %vm1010 = vcmp.lt.s32.totalorder %v1009, 1
        %v1011 = vsel %vm1010, 0.0, %v1007
        %v1012 = vld [vmem:[#allocation14 + $0x12] sm:$0x1]
        %v1013 = vperm.slane %v1012, 0
        %v1014 = vmul.f32 %v1011, %v1013
        %v1015 = vadd.f32 %v1006, %v1014
        %v1016 = vrot.slane %v1002, 6
        %vm1017 = vcmp.lt.s32.totalorder %v1009, 2
        %v1018 = vsel %vm1017, 0.0, %v1016
        %v1019 = vld [vmem:[#allocation14 + $0x11] sm:$0x1]
        %v1020 = vperm.slane %v1019, 0
        %v1021 = vmul.f32 %v1018, %v1020
        %v1022 = vadd.f32 %v1015, %v1021
        %v1023 = vrot.slane %v1002, 5
        %vm1024 = vcmp.lt.s32.totalorder %v1009, 3
        %v1025 = vsel %vm1024, 0.0, %v1023
        %v1026 = vld [vmem:[#allocation14 + $0x10] sm:$0x1]
        %v1027 = vperm.slane %v1026, 0
        %v1028 = vmul.f32 %v1025, %v1027
        %v1029 = vadd.f32 %v1022, %v1028
        %v1030 = vrot.slane %v1002, 4
        %vm1031 = vcmp.lt.s32.totalorder %v1009, 4
        %v1032 = vsel %vm1031, 0.0, %v1030
        %v1033 = vld [vmem:[#allocation14 + $0xf] sm:$0x1]
        %v1034 = vperm.slane %v1033, 0
        %v1035 = vmul.f32 %v1032, %v1034
        %v1036 = vadd.f32 %v1029, %v1035
        %v1037 = vrot.slane %v1002, 3
        %vm1038 = vcmp.lt.s32.totalorder %v1009, 5
        %v1039 = vsel %vm1038, 0.0, %v1037
        %v1040 = vld [vmem:[#allocation14 + $0xe] sm:$0x1]
        %v1041 = vperm.slane %v1040, 0
        %v1042 = vmul.f32 %v1039, %v1041
        %v1043 = vadd.f32 %v1036, %v1042
        %v1044 = vrot.slane %v1002, 2
        %vm1045 = vcmp.lt.s32.totalorder %v1009, 6
        %v1046 = vsel %vm1045, 0.0, %v1044
        %v1047 = vld [vmem:[#allocation14 + $0xd] sm:$0x1]
        %v1048 = vperm.slane %v1047, 0
        %v1049 = vmul.f32 %v1046, %v1048
        %v1050 = vadd.f32 %v1043, %v1049
        %v1051 = vrot.slane %v1002, 1
        %vm1052 = vcmp.lt.s32.totalorder %v1009, 7
        %v1053 = vsel %vm1052, 0.0, %v1051
        %v1054 = vld [vmem:[#allocation14 + $0xc] sm:$0x1]
        %v1055 = vperm.slane %v1054, 0
        %v1056 = vmul.f32 %v1053, %v1055
        %v1057 = vadd.f32 %v1050, %v1056
        %v1058 = vadd.f32 %v851, %v1002
        %v1059 = vadd.f32 %v1058, %v1057
        %v1060 = vmul.f32 %v1059, %v611
        %1061 = vst [vmem:[%s609] sm:$0xff] %v1060
        %s1062 = sand.u32 %s327, 1
        %s1063 = scalar_lea.sflag [#allocation4], %s1062
        %s1064 = sand.u32 %s327, 1
        %s1065 = smul.addr %s1064, 8
        %s1066 = scalar_lea.vmem [#allocation17], %s1065
        // Predicated region
        $region109: #{tpu_custom_call.1} parent=71 // pred_check
          %p1067 = pneg %p337
        $region110: #{tpu_custom_call.1} parent=71 // pred_check_branch
          %1069 = sbr.rel (%p1067) target = $region112
        $region111: #{tpu_custom_call.1} parent=71 // pred_region
          %1071 = vsyncadd %s1063, 0
          %s1072 = smul.addr %s36, 8
          %s1073 = scalar_lea.hbm %s13, %s1072
          %s1075 = sshll.u32 %s1066, 4
          %s1076 = int_to_ptr.vmem [resolvable:$true] %s1075
          %s1077 = sshll.u32 %s1073, 4
          %s1078 = int_to_ptr.hbm [resolvable:$true] %s1077
          %1080 = dma.vmem_to_hbm [thread:$0]  %s1076, 128, %s1078, %s1063
        $region112: #{tpu_custom_call.1} parent=71 // pred_fallthru
          _
      $region72: #{tpu_custom_call.1} parent=5 // pred_fallthru
        _
      %p1081 = scmp.le.s32.totalorder 2, %s31
      // Predicated region
      $region113: #{tpu_custom_call.1} parent=5 // pred_check
        %p1082 = pneg %p1081
      $region114: #{tpu_custom_call.1} parent=5 // pred_check_branch
        %1084 = sbr.rel (%p1082) target = $region116
      $region115: #{tpu_custom_call.1} parent=5 // pred_region
        %s1085 = ssub.s32 %s31, 2
        // Predicated region
        $region117: #{tpu_custom_call.1} parent=115 // pred_check
          %p1086 = pneg %p343
        $region118: #{tpu_custom_call.1} parent=115 // pred_check_branch
          %1088 = sbr.rel (%p1086) target = $region120
        $region119: #{tpu_custom_call.1} parent=115 // pred_region
          %s1089 = sand.u32 %s328, 1
          %s1090 = scalar_lea.sflag [#allocation4], %s1089
          %s1091 = sand.u32 %s328, 1
          %s1092 = smul.addr %s1091, 8
          %s1093 = scalar_lea.vmem [#allocation17], %s1092
          %1095 = dma.done %s1090, 128
        $region120: #{tpu_custom_call.1} parent=115 // pred_fallthru
          _
      $region116: #{tpu_custom_call.1} parent=5 // pred_fallthru
        _
    $region6: #{tpu_custom_call.1} parent=1 // loop_footer
      %s35 = sadd.s32 1, %s31
    $region7: #{tpu_custom_call.1} parent=1 // loop_footer_branch
      %30 = sbr.rel target = $region3
    $region8: #{tpu_custom_call.1} parent=1 // loop_exit
      _
    %1096 = vsyncpa [#allocation3], 1
    %s1097 = scalar_lea.sflag [#allocation3], 1
    %1098 = vsyncpa %s1097, 1
    %1099 = vsyncpa [#allocation6], 1
    %s1100 = scalar_lea.sflag [#allocation6], 1
    %1101 = vsyncpa %s1100, 1
    %1102 = vsyncpa [#allocation9], 1
    %1103 = vsyncpa [#allocation12], 1
    %1104 = vsyncpa [#allocation15], 1
    %1105 = vsyncpa [#allocation4], 1
    %s1106 = scalar_lea.sflag [#allocation4], 1
    %1107 = vsyncpa %s1106, 1

</llo_original>
